<compile_context>
chip_gen: v6e
topology: v6e:2x2x1
jax: 0.10.0
libtpu: 0.0.40
codegen_flags: <defaults>
</compile_context>

<pallas_src>
import numpy as np
import jax
import jax.numpy as jnp
from jax.experimental import pallas as pl
from jax.experimental.pallas import tpu as pltpu

# ----------------------------- problem sizes ------------------------------
STATE_DIM = 20        # synthetic stand-in for env_test.state_dim
OUT_SIZE = 7          # action-space size
HIDDEN_SIZE = 32      # LSTM hidden size
BSIZE = 2
TIME_STEP = 8
D_IN = STATE_DIM + 2  # state ++ pose
LANES = 128

# ---- packed-slab row offsets (everything zero-padded to 128 lanes) --------
# bf16 slab (MXU weights); blocks start on 16-row (bf16 sublane-tile) bounds.
WB_W1S = 0                          # (STATE_DIM, 64->128)  fc1, state part
WB_W2 = 32                          # (64->128, 128)        fc2 (zero-padded rows)
WB_W3 = WB_W2 + 128                 # (128, 128)            fc3
WB_WIH = WB_W3 + 128                # (128, 4H) permuted    LSTM input projection
WB_WHD = WB_WIH + 128               # (H, OUT+1 -> 128)     merged dueling head
WB_ROWS = WB_WHD + HIDDEN_SIZE      # 448 rows

# f32 slab (recurrent weight + biases + pose rows); 8-row tile bounds.
WF_WHH = 0                          # (H, 4H) permuted      LSTM recurrent proj
WF_B1 = WF_WHH + HIDDEN_SIZE        # fc1 bias (64->128)
WF_B2 = WF_B1 + 1                   # fc2 bias
WF_B3 = WF_B2 + 1                   # fc3 bias
WF_BL = WF_B3 + 1                   # combined LSTM bias (permuted)
WF_BH = WF_BL + 1                   # merged head bias (OUT+1 -> 128)
WF_P0 = WF_BH + 1                   # fc1 pose weight row 0 (64->128)
WF_P1 = WF_P0 + 1                   # fc1 pose weight row 1
WF_ROWS = 40

_VMEM = pl.BlockSpec(memory_space=pltpu.MemorySpace.VMEM)


# ------------------------------- fused kernel ------------------------------
def qnet_fused_kernel(state_ref, pose_ref, h0_ref, c0_ref, wb_ref, wf_ref,
                      out_ref):
    B = h0_ref.shape[0]
    H = h0_ref.shape[1]
    T = state_ref.shape[0] // B          # rows are batch-major: row = b*T + t

    state = state_ref[...]               # (B*T, STATE_DIM) f32
    pose = pose_ref[...]                 # (B*T, 2)         f32

    # ---- fc1: state part on the MXU (bf16), pose part as 2 VPU FMAs -------
    h1 = jnp.dot(state.astype(jnp.bfloat16),
                 wb_ref[WB_W1S:WB_W1S + STATE_DIM, :],
                 preferred_element_type=jnp.float32)
    h1 = (h1
          + pose[:, 0:1] * wf_ref[WF_P0:WF_P0 + 1, :]
          + pose[:, 1:2] * wf_ref[WF_P1:WF_P1 + 1, :]
          + wf_ref[WF_B1:WF_B1 + 1, :])
    h1 = jnp.maximum(h1, 0.0)            # (B*T, 128); cols 64: are exactly 0

    # ---- fc2 / fc3 (bf16 MXU, f32 accumulate) ------------------------------
    h2 = jnp.maximum(
        jnp.dot(h1.astype(jnp.bfloat16), wb_ref[WB_W2:WB_W2 + 128, :],
                preferred_element_type=jnp.float32)
        + wf_ref[WF_B2:WF_B2 + 1, :], 0.0)
    feat = jnp.maximum(
        jnp.dot(h2.astype(jnp.bfloat16), wb_ref[WB_W3:WB_W3 + 128, :],
                preferred_element_type=jnp.float32)
        + wf_ref[WF_B3:WF_B3 + 1, :], 0.0)

    # ---- hoisted LSTM input projection for ALL timesteps: (B*T, 4H) -------
    gates_in = (jnp.dot(feat.astype(jnp.bfloat16),
                        wb_ref[WB_WIH:WB_WIH + 128, :],
                        preferred_element_type=jnp.float32)
                + wf_ref[WF_BL:WF_BL + 1, :])

    # ---- recurrence (statically unrolled; gate order is (i, f, o, g)) -----
    whh = wf_ref[WF_WHH:WF_WHH + H, :]   # (H, 4H) f32, read once
    h = h0_ref[...]
    c = c0_ref[...]
    for t in range(T):
        # batch rows for timestep t live at {b*T + t}: cheap sublane selects.
        g_in = jnp.concatenate(
            [gates_in[b * T + t: b * T + t + 1, :] for b in range(B)], axis=0)
        g_t = g_in + jnp.dot(h, whh, preferred_element_type=jnp.float32)
        sig = jax.nn.sigmoid(g_t[:, :3 * H])     # one wide EUP pass (i,f,o)
        g_c = jnp.tanh(g_t[:, 3 * H:])           # one EUP pass (g)
        i_g = sig[:, 0 * H:1 * H]
        f_g = sig[:, 1 * H:2 * H]
        o_g = sig[:, 2 * H:3 * H]
        c = f_g * c + i_g * g_c
        h = o_g * jnp.tanh(c)

    # ---- merged dueling head: [adv | val] in one matmul --------------------
    head = (jnp.dot(h.astype(jnp.bfloat16), wb_ref[WB_WHD:WB_WHD + H, :],
                    preferred_element_type=jnp.float32)
            + wf_ref[WF_BH:WF_BH + 1, :])        # (B, 128), cols OUT+1: are 0
    adv = head[:, :OUT_SIZE]
    val = head[:, OUT_SIZE:OUT_SIZE + 1]
    q = val + (adv - jnp.mean(adv, axis=1, keepdims=True))     # (B, OUT_SIZE)

    # ---- single lane-dense packed output: [q | h_n | c_n | 0-pad] ----------
    pad = jnp.zeros((B, LANES - OUT_SIZE - 2 * H), jnp.float32)
    out_ref[...] = jnp.concatenate([q, h, c, pad], axis=1)


# ------------------------------- wrapper -----------------------------------
def prepare_kernel_params(p):
    """One-time weight preprocessing (off the forward path): permute LSTM
    gate columns, merge dueling heads, pack everything into two slabs."""
    H = HIDDEN_SIZE
    # permute gate columns: PyTorch (i, f, g, o) -> kernel (i, f, o, g)
    perm = np.concatenate([np.arange(0, 2 * H),
                           np.arange(3 * H, 4 * H),
                           np.arange(2 * H, 3 * H)])

    w1 = np.asarray(p["w1"], np.float32)                 # (D_IN, 64)
    w_ih = np.asarray(p["w_ih"], np.float32)[:, perm]    # (128, 4H)
    w_hh = np.asarray(p["w_hh"], np.float32)[:, perm]    # (H, 4H)
    b_l = np.asarray(p["b_lstm"], np.float32)[:, perm]   # (1, 4H)
    w_head = np.concatenate([np.asarray(p["w_adv"], np.float32),
                             np.asarray(p["w_val"], np.float32)], axis=1)
    b_head = np.concatenate([np.asarray(p["b_adv"], np.float32),
                             np.asarray(p["b_val"], np.float32)], axis=1)

    wb = np.zeros((WB_ROWS, LANES), np.float32)
    wb[WB_W1S:WB_W1S + STATE_DIM, :64] = w1[:STATE_DIM]
    wb[WB_W2:WB_W2 + 64, :] = np.asarray(p["w2"], np.float32)
    wb[WB_W3:WB_W3 + 128, :] = np.asarray(p["w3"], np.float32)
    wb[WB_WIH:WB_WIH + 128, :] = w_ih
    wb[WB_WHD:WB_WHD + H, :OUT_SIZE + 1] = w_head

    wf = np.zeros((WF_ROWS, LANES), np.float32)
    wf[WF_WHH:WF_WHH + H, :] = w_hh
    wf[WF_B1, :64] = np.asarray(p["b1"], np.float32)[0]
    wf[WF_B2, :] = np.asarray(p["b2"], np.float32)[0]
    wf[WF_B3, :] = np.asarray(p["b3"], np.float32)[0]
    wf[WF_BL, :] = b_l[0]
    wf[WF_BH, :OUT_SIZE + 1] = b_head[0]
    wf[WF_P0, :64] = w1[STATE_DIM]
    wf[WF_P1, :64] = w1[STATE_DIM + 1]

    return {"wb": jnp.asarray(wb, jnp.bfloat16),
            "wf": jnp.asarray(wf, jnp.float32)}


def _q_net_forward(state, pose, bsize, time_step, hidden_state, cell_state, kp):
    # free, contiguous batch-major flatten (no wrapper transposes)
    state_f = state.reshape(bsize * time_step, STATE_DIM).astype(jnp.float32)
    pose_f = pose.reshape(bsize * time_step, 2).astype(jnp.float32)
    h0 = hidden_state.reshape(bsize, HIDDEN_SIZE).astype(jnp.float32)
    c0 = cell_state.reshape(bsize, HIDDEN_SIZE).astype(jnp.float32)

    packed = pl.pallas_call(
        qnet_fused_kernel,
        out_shape=jax.ShapeDtypeStruct((bsize, LANES), jnp.float32),
        in_specs=[_VMEM] * 6,
        out_specs=_VMEM,
    )(state_f, pose_f, h0, c0, kp["wb"], kp["wf"])

    q = packed[:, :OUT_SIZE]
    h_n = packed[:, OUT_SIZE:OUT_SIZE + HIDDEN_SIZE]
    c_n = packed[:, OUT_SIZE + HIDDEN_SIZE:OUT_SIZE + 2 * HIDDEN_SIZE]
    # match PyTorch (num_layers=1, B, H) shape for hidden/cell returns
    return q, (h_n[None, :, :], c_n[None, :, :])


q_net_forward = jax.jit(_q_net_forward, static_argnums=(2, 3))


# --------------------------- parameter init ---------------------------------
def xavier_uniform(key, din, dout, gain):
    limit = gain * np.sqrt(6.0 / (din + dout))
    return jax.random.uniform(key, (din, dout), jnp.float32, -limit, limit)


def init_params(key):
    gain = np.sqrt(2.0)  # calculate_gain('relu')
    ks = jax.random.split(key, 10)
    H = HIDDEN_SIZE
    lstm_lim = 1.0 / np.sqrt(H)
    return {
        "w1": xavier_uniform(ks[0], D_IN, 64, gain),
        "b1": jnp.zeros((1, 64), jnp.float32),
        "w2": xavier_uniform(ks[1], 64, 128, gain),
        "b2": jnp.zeros((1, 128), jnp.float32),
        "w3": xavier_uniform(ks[2], 128, 128, gain),
        "b3": jnp.zeros((1, 128), jnp.float32),
        # LSTM weights stored as (in, 4H); PyTorch gate order i, f, g, o.
        "w_ih": jax.random.uniform(ks[3], (128, 4 * H), jnp.float32, -lstm_lim, lstm_lim),
        "w_hh": jax.random.uniform(ks[4], (H, 4 * H), jnp.float32, -lstm_lim, lstm_lim),
        # combined bias = b_ih + b_hh
        "b_lstm": (jax.random.uniform(ks[5], (1, 4 * H), jnp.float32, -lstm_lim, lstm_lim)
                   + jax.random.uniform(ks[6], (1, 4 * H), jnp.float32, -lstm_lim, lstm_lim)),
        "w_adv": xavier_uniform(ks[7], H, OUT_SIZE, gain),
        "b_adv": jnp.zeros((1, OUT_SIZE), jnp.float32),
        "w_val": xavier_uniform(ks[8], H, 1, gain),
        "b_val": jnp.zeros((1, 1), jnp.float32),
    }


# ---------------------------- pure-JAX reference ----------------------------
def q_net_reference(state, pose, bsize, time_step, h0, c0, p):
    x = jnp.concatenate(
        [state.reshape(bsize * time_step, STATE_DIM),
         pose.reshape(bsize * time_step, 2)], axis=1)
    x = jnp.maximum(x @ p["w1"] + p["b1"], 0.0)
    x = jnp.maximum(x @ p["w2"] + p["b2"], 0.0)
    x = jnp.maximum(x @ p["w3"] + p["b3"], 0.0)
    x = x.reshape(bsize, time_step, 128)
    H = HIDDEN_SIZE
    h = h0.reshape(bsize, H)
    c = c0.reshape(bsize, H)
    for t in range(time_step):
        gates = x[:, t, :] @ p["w_ih"] + h @ p["w_hh"] + p["b_lstm"]
        i_g = jax.nn.sigmoid(gates[:, 0 * H:1 * H])
        f_g = jax.nn.sigmoid(gates[:, 1 * H:2 * H])
        g_g = jnp.tanh(gates[:, 2 * H:3 * H])
        o_g = jax.nn.sigmoid(gates[:, 3 * H:4 * H])
        c = f_g * c + i_g * g_g
        h = o_g * jnp.tanh(c)
    adv = h @ p["w_adv"] + p["b_adv"]
    val = h @ p["w_val"] + p["b_val"]
    q = val + (adv - jnp.mean(adv, axis=1, keepdims=True))
    return q, h, c


# --------------------------------- main --------------------------------------
if __name__ == "__main__":
    key = jax.random.PRNGKey(0)
    k_par, k_state, k_pose = jax.random.split(key, 3)

    params = init_params(k_par)
    kparams = prepare_kernel_params(params)   # one-time, off the forward path

    state = jax.random.normal(k_state, (BSIZE, TIME_STEP, STATE_DIM), jnp.float32)
    pose = jax.random.normal(k_pose, (BSIZE, TIME_STEP, 2), jnp.float32)
    hidden_state = jnp.zeros((1, BSIZE, HIDDEN_SIZE), jnp.float32)
    cell_state = jnp.zeros((1, BSIZE, HIDDEN_SIZE), jnp.float32)

    qout, (h_n, c_n) = q_net_forward(
        state, pose, BSIZE, TIME_STEP, hidden_state, cell_state, kparams)
    jax.block_until_ready((qout, h_n, c_n))

    # correctness check against a pure-f32 JAX reference (original layout).
    # Tolerances relaxed because MXU matmuls run in bf16 (f32 accumulation).
    q_ref, h_ref, c_ref = q_net_reference(
        state, pose, BSIZE, TIME_STEP, hidden_state, cell_state, params)
    np.testing.assert_allclose(np.asarray(qout), np.asarray(q_ref), rtol=5e-2, atol=5e-2)
    np.testing.assert_allclose(np.asarray(h_n[0]), np.asarray(h_ref), rtol=5e-2, atol=5e-2)
    np.testing.assert_allclose(np.asarray(c_n[0]), np.asarray(c_ref), rtol=5e-2, atol=5e-2)

    print("KERNEL_OK")
</pallas_src>

<mosaic_0001>
module attributes {stable_mosaic.version = 11 : i64} {
  func.func @qnet_fused_kernel(%arg0: memref<16x20xf32, #tpu.memory_space<vmem>>, %arg1: memref<16x2xf32, #tpu.memory_space<vmem>>, %arg2: memref<2x32xf32, #tpu.memory_space<vmem>>, %arg3: memref<2x32xf32, #tpu.memory_space<vmem>>, %arg4: memref<448x128xbf16, #tpu.memory_space<vmem>>, %arg5: memref<40x128xf32, #tpu.memory_space<vmem>>, %arg6: memref<2x128xf32, #tpu.memory_space<vmem>>) attributes {dimension_semantics = [], scalar_prefetch = 0 : i64, scratch_operands = 0 : i64, tpu.core_type = #tpu.core_type<tc>} {
    %c0 = arith.constant 0 : index
    %c0_0 = arith.constant 0 : index
    %0 = vector.load %arg0[%c0, %c0_0] : memref<16x20xf32, #tpu.memory_space<vmem>>, vector<16x20xf32>
    %c0_1 = arith.constant 0 : index
    %c0_2 = arith.constant 0 : index
    %1 = vector.load %arg1[%c0_1, %c0_2] : memref<16x2xf32, #tpu.memory_space<vmem>>, vector<16x2xf32>
    %2 = arith.truncf %0 : vector<16x20xf32> to vector<16x20xbf16>
    %c0_3 = arith.constant 0 : index
    %c0_4 = arith.constant 0 : index
    %3 = vector.load %arg4[%c0_3, %c0_4] : memref<448x128xbf16, #tpu.memory_space<vmem>>, vector<20x128xbf16>
    %cst = arith.constant dense<0.000000e+00> : vector<16x128xf32>
    %4 = tpu.matmul %2, %3, %cst {dimension_numbers = #tpu.dot_dimension_numbers<[1], [0], [0], [1], [0, 0, 1, 1], [], []>} : vector<16x20xbf16>, vector<20x128xbf16>, vector<16x128xf32> -> vector<16x128xf32>
    %5 = vector.extract_strided_slice %1 {offsets = [0, 0], sizes = [16, 1], strides = [1, 1]} : vector<16x2xf32> to vector<16x1xf32>
    %c37 = arith.constant 37 : index
    %c0_5 = arith.constant 0 : index
    %6 = vector.load %arg5[%c37, %c0_5] : memref<40x128xf32, #tpu.memory_space<vmem>>, vector<1x128xf32>
    %7 = vector.broadcast %5 : vector<16x1xf32> to vector<16x128xf32>
    %8 = vector.broadcast %6 : vector<1x128xf32> to vector<16x128xf32>
    %9 = arith.mulf %7, %8 : vector<16x128xf32>
    %10 = arith.addf %4, %9 : vector<16x128xf32>
    %11 = vector.extract_strided_slice %1 {offsets = [0, 1], sizes = [16, 1], strides = [1, 1]} : vector<16x2xf32> to vector<16x1xf32>
    %c38 = arith.constant 38 : index
    %c0_6 = arith.constant 0 : index
    %12 = vector.load %arg5[%c38, %c0_6] : memref<40x128xf32, #tpu.memory_space<vmem>>, vector<1x128xf32>
    %13 = vector.broadcast %11 : vector<16x1xf32> to vector<16x128xf32>
    %14 = vector.broadcast %12 : vector<1x128xf32> to vector<16x128xf32>
    %15 = arith.mulf %13, %14 : vector<16x128xf32>
    %16 = arith.addf %10, %15 : vector<16x128xf32>
    %c32 = arith.constant 32 : index
    %c0_7 = arith.constant 0 : index
    %17 = vector.load %arg5[%c32, %c0_7] : memref<40x128xf32, #tpu.memory_space<vmem>>, vector<1x128xf32>
    %18 = vector.broadcast %17 : vector<1x128xf32> to vector<16x128xf32>
    %19 = arith.addf %16, %18 : vector<16x128xf32>
    %cst_8 = arith.constant 0.000000e+00 : f32
    %20 = vector.broadcast %cst_8 : f32 to vector<16x128xf32>
    %21 = arith.maximumf %19, %20 : vector<16x128xf32>
    %22 = arith.truncf %21 : vector<16x128xf32> to vector<16x128xbf16>
    %c32_9 = arith.constant 32 : index
    %c0_10 = arith.constant 0 : index
    %23 = vector.load %arg4[%c32_9, %c0_10] : memref<448x128xbf16, #tpu.memory_space<vmem>>, vector<128x128xbf16>
    %cst_11 = arith.constant dense<0.000000e+00> : vector<16x128xf32>
    %24 = tpu.matmul %22, %23, %cst_11 {dimension_numbers = #tpu.dot_dimension_numbers<[1], [0], [0], [1], [0, 0, 1, 1], [], []>} : vector<16x128xbf16>, vector<128x128xbf16>, vector<16x128xf32> -> vector<16x128xf32>
    %c33 = arith.constant 33 : index
    %c0_12 = arith.constant 0 : index
    %25 = vector.load %arg5[%c33, %c0_12] : memref<40x128xf32, #tpu.memory_space<vmem>>, vector<1x128xf32>
    %26 = vector.broadcast %25 : vector<1x128xf32> to vector<16x128xf32>
    %27 = arith.addf %24, %26 : vector<16x128xf32>
    %cst_13 = arith.constant 0.000000e+00 : f32
    %28 = vector.broadcast %cst_13 : f32 to vector<16x128xf32>
    %29 = arith.maximumf %27, %28 : vector<16x128xf32>
    %30 = arith.truncf %29 : vector<16x128xf32> to vector<16x128xbf16>
    %c160 = arith.constant 160 : index
    %c0_14 = arith.constant 0 : index
    %31 = vector.load %arg4[%c160, %c0_14] : memref<448x128xbf16, #tpu.memory_space<vmem>>, vector<128x128xbf16>
    %cst_15 = arith.constant dense<0.000000e+00> : vector<16x128xf32>
    %32 = tpu.matmul %30, %31, %cst_15 {dimension_numbers = #tpu.dot_dimension_numbers<[1], [0], [0], [1], [0, 0, 1, 1], [], []>} : vector<16x128xbf16>, vector<128x128xbf16>, vector<16x128xf32> -> vector<16x128xf32>
    %c34 = arith.constant 34 : index
    %c0_16 = arith.constant 0 : index
    %33 = vector.load %arg5[%c34, %c0_16] : memref<40x128xf32, #tpu.memory_space<vmem>>, vector<1x128xf32>
    %34 = vector.broadcast %33 : vector<1x128xf32> to vector<16x128xf32>
    %35 = arith.addf %32, %34 : vector<16x128xf32>
    %cst_17 = arith.constant 0.000000e+00 : f32
    %36 = vector.broadcast %cst_17 : f32 to vector<16x128xf32>
    %37 = arith.maximumf %35, %36 : vector<16x128xf32>
    %38 = arith.truncf %37 : vector<16x128xf32> to vector<16x128xbf16>
    %c288 = arith.constant 288 : index
    %c0_18 = arith.constant 0 : index
    %39 = vector.load %arg4[%c288, %c0_18] : memref<448x128xbf16, #tpu.memory_space<vmem>>, vector<128x128xbf16>
    %cst_19 = arith.constant dense<0.000000e+00> : vector<16x128xf32>
    %40 = tpu.matmul %38, %39, %cst_19 {dimension_numbers = #tpu.dot_dimension_numbers<[1], [0], [0], [1], [0, 0, 1, 1], [], []>} : vector<16x128xbf16>, vector<128x128xbf16>, vector<16x128xf32> -> vector<16x128xf32>
    %c35 = arith.constant 35 : index
    %c0_20 = arith.constant 0 : index
    %41 = vector.load %arg5[%c35, %c0_20] : memref<40x128xf32, #tpu.memory_space<vmem>>, vector<1x128xf32>
    %42 = vector.broadcast %41 : vector<1x128xf32> to vector<16x128xf32>
    %43 = arith.addf %40, %42 : vector<16x128xf32>
    %c0_21 = arith.constant 0 : index
    %c0_22 = arith.constant 0 : index
    %44 = vector.load %arg5[%c0_21, %c0_22] : memref<40x128xf32, #tpu.memory_space<vmem>>, vector<32x128xf32>
    %c0_23 = arith.constant 0 : index
    %c0_24 = arith.constant 0 : index
    %45 = vector.load %arg2[%c0_23, %c0_24] : memref<2x32xf32, #tpu.memory_space<vmem>>, vector<2x32xf32>
    %c0_25 = arith.constant 0 : index
    %c0_26 = arith.constant 0 : index
    %46 = vector.load %arg3[%c0_25, %c0_26] : memref<2x32xf32, #tpu.memory_space<vmem>>, vector<2x32xf32>
    %47 = vector.extract_strided_slice %43 {offsets = [0, 0], sizes = [1, 128], strides = [1, 1]} : vector<16x128xf32> to vector<1x128xf32>
    %48 = vector.extract_strided_slice %43 {offsets = [8, 0], sizes = [1, 128], strides = [1, 1]} : vector<16x128xf32> to vector<1x128xf32>
    %49 = tpu.concatenate %47, %48 in 0 : vector<1x128xf32>, vector<1x128xf32> -> vector<2x128xf32>
    %cst_27 = arith.constant dense<0.000000e+00> : vector<2x128xf32>
    %50 = tpu.matmul %45, %44, %cst_27 {dimension_numbers = #tpu.dot_dimension_numbers<[1], [0], [0], [1], [0, 0, 1, 1], [], []>} : vector<2x32xf32>, vector<32x128xf32>, vector<2x128xf32> -> vector<2x128xf32>
    %51 = arith.addf %49, %50 : vector<2x128xf32>
    %52 = vector.extract_strided_slice %51 {offsets = [0, 0], sizes = [2, 96], strides = [1, 1]} : vector<2x128xf32> to vector<2x96xf32>
    %53 = arith.negf %52 : vector<2x96xf32>
    %54 = math.exp %53 : vector<2x96xf32>
    %cst_28 = arith.constant 1.000000e+00 : f32
    %55 = vector.broadcast %cst_28 : f32 to vector<2x96xf32>
    %56 = arith.addf %55, %54 : vector<2x96xf32>
    %57 = arith.divf %55, %56 : vector<2x96xf32>
    %58 = vector.extract_strided_slice %51 {offsets = [0, 96], sizes = [2, 32], strides = [1, 1]} : vector<2x128xf32> to vector<2x32xf32>
    %59 = math.tanh %58 : vector<2x32xf32>
    %60 = vector.extract_strided_slice %57 {offsets = [0, 0], sizes = [2, 32], strides = [1, 1]} : vector<2x96xf32> to vector<2x32xf32>
    %61 = vector.extract_strided_slice %57 {offsets = [0, 32], sizes = [2, 32], strides = [1, 1]} : vector<2x96xf32> to vector<2x32xf32>
    %62 = vector.extract_strided_slice %57 {offsets = [0, 64], sizes = [2, 32], strides = [1, 1]} : vector<2x96xf32> to vector<2x32xf32>
    %63 = arith.mulf %61, %46 : vector<2x32xf32>
    %64 = arith.mulf %60, %59 : vector<2x32xf32>
    %65 = arith.addf %63, %64 : vector<2x32xf32>
    %66 = math.tanh %65 : vector<2x32xf32>
    %67 = arith.mulf %62, %66 : vector<2x32xf32>
    %68 = vector.extract_strided_slice %43 {offsets = [1, 0], sizes = [1, 128], strides = [1, 1]} : vector<16x128xf32> to vector<1x128xf32>
    %69 = vector.extract_strided_slice %43 {offsets = [9, 0], sizes = [1, 128], strides = [1, 1]} : vector<16x128xf32> to vector<1x128xf32>
    %70 = tpu.concatenate %68, %69 in 0 : vector<1x128xf32>, vector<1x128xf32> -> vector<2x128xf32>
    %cst_29 = arith.constant dense<0.000000e+00> : vector<2x128xf32>
    %71 = tpu.matmul %67, %44, %cst_29 {dimension_numbers = #tpu.dot_dimension_numbers<[1], [0], [0], [1], [0, 0, 1, 1], [], []>} : vector<2x32xf32>, vector<32x128xf32>, vector<2x128xf32> -> vector<2x128xf32>
    %72 = arith.addf %70, %71 : vector<2x128xf32>
    %73 = vector.extract_strided_slice %72 {offsets = [0, 0], sizes = [2, 96], strides = [1, 1]} : vector<2x128xf32> to vector<2x96xf32>
    %74 = arith.negf %73 : vector<2x96xf32>
    %75 = math.exp %74 : vector<2x96xf32>
    %cst_30 = arith.constant 1.000000e+00 : f32
    %76 = vector.broadcast %cst_30 : f32 to vector<2x96xf32>
    %77 = arith.addf %76, %75 : vector<2x96xf32>
    %78 = arith.divf %76, %77 : vector<2x96xf32>
    %79 = vector.extract_strided_slice %72 {offsets = [0, 96], sizes = [2, 32], strides = [1, 1]} : vector<2x128xf32> to vector<2x32xf32>
    %80 = math.tanh %79 : vector<2x32xf32>
    %81 = vector.extract_strided_slice %78 {offsets = [0, 0], sizes = [2, 32], strides = [1, 1]} : vector<2x96xf32> to vector<2x32xf32>
    %82 = vector.extract_strided_slice %78 {offsets = [0, 32], sizes = [2, 32], strides = [1, 1]} : vector<2x96xf32> to vector<2x32xf32>
    %83 = vector.extract_strided_slice %78 {offsets = [0, 64], sizes = [2, 32], strides = [1, 1]} : vector<2x96xf32> to vector<2x32xf32>
    %84 = arith.mulf %82, %65 : vector<2x32xf32>
    %85 = arith.mulf %81, %80 : vector<2x32xf32>
    %86 = arith.addf %84, %85 : vector<2x32xf32>
    %87 = math.tanh %86 : vector<2x32xf32>
    %88 = arith.mulf %83, %87 : vector<2x32xf32>
    %89 = vector.extract_strided_slice %43 {offsets = [2, 0], sizes = [1, 128], strides = [1, 1]} : vector<16x128xf32> to vector<1x128xf32>
    %90 = vector.extract_strided_slice %43 {offsets = [10, 0], sizes = [1, 128], strides = [1, 1]} : vector<16x128xf32> to vector<1x128xf32>
    %91 = tpu.concatenate %89, %90 in 0 : vector<1x128xf32>, vector<1x128xf32> -> vector<2x128xf32>
    %cst_31 = arith.constant dense<0.000000e+00> : vector<2x128xf32>
    %92 = tpu.matmul %88, %44, %cst_31 {dimension_numbers = #tpu.dot_dimension_numbers<[1], [0], [0], [1], [0, 0, 1, 1], [], []>} : vector<2x32xf32>, vector<32x128xf32>, vector<2x128xf32> -> vector<2x128xf32>
    %93 = arith.addf %91, %92 : vector<2x128xf32>
    %94 = vector.extract_strided_slice %93 {offsets = [0, 0], sizes = [2, 96], strides = [1, 1]} : vector<2x128xf32> to vector<2x96xf32>
    %95 = arith.negf %94 : vector<2x96xf32>
    %96 = math.exp %95 : vector<2x96xf32>
    %cst_32 = arith.constant 1.000000e+00 : f32
    %97 = vector.broadcast %cst_32 : f32 to vector<2x96xf32>
    %98 = arith.addf %97, %96 : vector<2x96xf32>
    %99 = arith.divf %97, %98 : vector<2x96xf32>
    %100 = vector.extract_strided_slice %93 {offsets = [0, 96], sizes = [2, 32], strides = [1, 1]} : vector<2x128xf32> to vector<2x32xf32>
    %101 = math.tanh %100 : vector<2x32xf32>
    %102 = vector.extract_strided_slice %99 {offsets = [0, 0], sizes = [2, 32], strides = [1, 1]} : vector<2x96xf32> to vector<2x32xf32>
    %103 = vector.extract_strided_slice %99 {offsets = [0, 32], sizes = [2, 32], strides = [1, 1]} : vector<2x96xf32> to vector<2x32xf32>
    %104 = vector.extract_strided_slice %99 {offsets = [0, 64], sizes = [2, 32], strides = [1, 1]} : vector<2x96xf32> to vector<2x32xf32>
    %105 = arith.mulf %103, %86 : vector<2x32xf32>
    %106 = arith.mulf %102, %101 : vector<2x32xf32>
    %107 = arith.addf %105, %106 : vector<2x32xf32>
    %108 = math.tanh %107 : vector<2x32xf32>
    %109 = arith.mulf %104, %108 : vector<2x32xf32>
    %110 = vector.extract_strided_slice %43 {offsets = [3, 0], sizes = [1, 128], strides = [1, 1]} : vector<16x128xf32> to vector<1x128xf32>
    %111 = vector.extract_strided_slice %43 {offsets = [11, 0], sizes = [1, 128], strides = [1, 1]} : vector<16x128xf32> to vector<1x128xf32>
    %112 = tpu.concatenate %110, %111 in 0 : vector<1x128xf32>, vector<1x128xf32> -> vector<2x128xf32>
    %cst_33 = arith.constant dense<0.000000e+00> : vector<2x128xf32>
    %113 = tpu.matmul %109, %44, %cst_33 {dimension_numbers = #tpu.dot_dimension_numbers<[1], [0], [0], [1], [0, 0, 1, 1], [], []>} : vector<2x32xf32>, vector<32x128xf32>, vector<2x128xf32> -> vector<2x128xf32>
    %114 = arith.addf %112, %113 : vector<2x128xf32>
    %115 = vector.extract_strided_slice %114 {offsets = [0, 0], sizes = [2, 96], strides = [1, 1]} : vector<2x128xf32> to vector<2x96xf32>
    %116 = arith.negf %115 : vector<2x96xf32>
    %117 = math.exp %116 : vector<2x96xf32>
    %cst_34 = arith.constant 1.000000e+00 : f32
    %118 = vector.broadcast %cst_34 : f32 to vector<2x96xf32>
    %119 = arith.addf %118, %117 : vector<2x96xf32>
    %120 = arith.divf %118, %119 : vector<2x96xf32>
    %121 = vector.extract_strided_slice %114 {offsets = [0, 96], sizes = [2, 32], strides = [1, 1]} : vector<2x128xf32> to vector<2x32xf32>
    %122 = math.tanh %121 : vector<2x32xf32>
    %123 = vector.extract_strided_slice %120 {offsets = [0, 0], sizes = [2, 32], strides = [1, 1]} : vector<2x96xf32> to vector<2x32xf32>
    %124 = vector.extract_strided_slice %120 {offsets = [0, 32], sizes = [2, 32], strides = [1, 1]} : vector<2x96xf32> to vector<2x32xf32>
    %125 = vector.extract_strided_slice %120 {offsets = [0, 64], sizes = [2, 32], strides = [1, 1]} : vector<2x96xf32> to vector<2x32xf32>
    %126 = arith.mulf %124, %107 : vector<2x32xf32>
    %127 = arith.mulf %123, %122 : vector<2x32xf32>
    %128 = arith.addf %126, %127 : vector<2x32xf32>
    %129 = math.tanh %128 : vector<2x32xf32>
    %130 = arith.mulf %125, %129 : vector<2x32xf32>
    %131 = vector.extract_strided_slice %43 {offsets = [4, 0], sizes = [1, 128], strides = [1, 1]} : vector<16x128xf32> to vector<1x128xf32>
    %132 = vector.extract_strided_slice %43 {offsets = [12, 0], sizes = [1, 128], strides = [1, 1]} : vector<16x128xf32> to vector<1x128xf32>
    %133 = tpu.concatenate %131, %132 in 0 : vector<1x128xf32>, vector<1x128xf32> -> vector<2x128xf32>
    %cst_35 = arith.constant dense<0.000000e+00> : vector<2x128xf32>
    %134 = tpu.matmul %130, %44, %cst_35 {dimension_numbers = #tpu.dot_dimension_numbers<[1], [0], [0], [1], [0, 0, 1, 1], [], []>} : vector<2x32xf32>, vector<32x128xf32>, vector<2x128xf32> -> vector<2x128xf32>
    %135 = arith.addf %133, %134 : vector<2x128xf32>
    %136 = vector.extract_strided_slice %135 {offsets = [0, 0], sizes = [2, 96], strides = [1, 1]} : vector<2x128xf32> to vector<2x96xf32>
    %137 = arith.negf %136 : vector<2x96xf32>
    %138 = math.exp %137 : vector<2x96xf32>
    %cst_36 = arith.constant 1.000000e+00 : f32
    %139 = vector.broadcast %cst_36 : f32 to vector<2x96xf32>
    %140 = arith.addf %139, %138 : vector<2x96xf32>
    %141 = arith.divf %139, %140 : vector<2x96xf32>
    %142 = vector.extract_strided_slice %135 {offsets = [0, 96], sizes = [2, 32], strides = [1, 1]} : vector<2x128xf32> to vector<2x32xf32>
    %143 = math.tanh %142 : vector<2x32xf32>
    %144 = vector.extract_strided_slice %141 {offsets = [0, 0], sizes = [2, 32], strides = [1, 1]} : vector<2x96xf32> to vector<2x32xf32>
    %145 = vector.extract_strided_slice %141 {offsets = [0, 32], sizes = [2, 32], strides = [1, 1]} : vector<2x96xf32> to vector<2x32xf32>
    %146 = vector.extract_strided_slice %141 {offsets = [0, 64], sizes = [2, 32], strides = [1, 1]} : vector<2x96xf32> to vector<2x32xf32>
    %147 = arith.mulf %145, %128 : vector<2x32xf32>
    %148 = arith.mulf %144, %143 : vector<2x32xf32>
    %149 = arith.addf %147, %148 : vector<2x32xf32>
    %150 = math.tanh %149 : vector<2x32xf32>
    %151 = arith.mulf %146, %150 : vector<2x32xf32>
    %152 = vector.extract_strided_slice %43 {offsets = [5, 0], sizes = [1, 128], strides = [1, 1]} : vector<16x128xf32> to vector<1x128xf32>
    %153 = vector.extract_strided_slice %43 {offsets = [13, 0], sizes = [1, 128], strides = [1, 1]} : vector<16x128xf32> to vector<1x128xf32>
    %154 = tpu.concatenate %152, %153 in 0 : vector<1x128xf32>, vector<1x128xf32> -> vector<2x128xf32>
    %cst_37 = arith.constant dense<0.000000e+00> : vector<2x128xf32>
    %155 = tpu.matmul %151, %44, %cst_37 {dimension_numbers = #tpu.dot_dimension_numbers<[1], [0], [0], [1], [0, 0, 1, 1], [], []>} : vector<2x32xf32>, vector<32x128xf32>, vector<2x128xf32> -> vector<2x128xf32>
    %156 = arith.addf %154, %155 : vector<2x128xf32>
    %157 = vector.extract_strided_slice %156 {offsets = [0, 0], sizes = [2, 96], strides = [1, 1]} : vector<2x128xf32> to vector<2x96xf32>
    %158 = arith.negf %157 : vector<2x96xf32>
    %159 = math.exp %158 : vector<2x96xf32>
    %cst_38 = arith.constant 1.000000e+00 : f32
    %160 = vector.broadcast %cst_38 : f32 to vector<2x96xf32>
    %161 = arith.addf %160, %159 : vector<2x96xf32>
    %162 = arith.divf %160, %161 : vector<2x96xf32>
    %163 = vector.extract_strided_slice %156 {offsets = [0, 96], sizes = [2, 32], strides = [1, 1]} : vector<2x128xf32> to vector<2x32xf32>
    %164 = math.tanh %163 : vector<2x32xf32>
    %165 = vector.extract_strided_slice %162 {offsets = [0, 0], sizes = [2, 32], strides = [1, 1]} : vector<2x96xf32> to vector<2x32xf32>
    %166 = vector.extract_strided_slice %162 {offsets = [0, 32], sizes = [2, 32], strides = [1, 1]} : vector<2x96xf32> to vector<2x32xf32>
    %167 = vector.extract_strided_slice %162 {offsets = [0, 64], sizes = [2, 32], strides = [1, 1]} : vector<2x96xf32> to vector<2x32xf32>
    %168 = arith.mulf %166, %149 : vector<2x32xf32>
    %169 = arith.mulf %165, %164 : vector<2x32xf32>
    %170 = arith.addf %168, %169 : vector<2x32xf32>
    %171 = math.tanh %170 : vector<2x32xf32>
    %172 = arith.mulf %167, %171 : vector<2x32xf32>
    %173 = vector.extract_strided_slice %43 {offsets = [6, 0], sizes = [1, 128], strides = [1, 1]} : vector<16x128xf32> to vector<1x128xf32>
    %174 = vector.extract_strided_slice %43 {offsets = [14, 0], sizes = [1, 128], strides = [1, 1]} : vector<16x128xf32> to vector<1x128xf32>
    %175 = tpu.concatenate %173, %174 in 0 : vector<1x128xf32>, vector<1x128xf32> -> vector<2x128xf32>
    %cst_39 = arith.constant dense<0.000000e+00> : vector<2x128xf32>
    %176 = tpu.matmul %172, %44, %cst_39 {dimension_numbers = #tpu.dot_dimension_numbers<[1], [0], [0], [1], [0, 0, 1, 1], [], []>} : vector<2x32xf32>, vector<32x128xf32>, vector<2x128xf32> -> vector<2x128xf32>
    %177 = arith.addf %175, %176 : vector<2x128xf32>
    %178 = vector.extract_strided_slice %177 {offsets = [0, 0], sizes = [2, 96], strides = [1, 1]} : vector<2x128xf32> to vector<2x96xf32>
    %179 = arith.negf %178 : vector<2x96xf32>
    %180 = math.exp %179 : vector<2x96xf32>
    %cst_40 = arith.constant 1.000000e+00 : f32
    %181 = vector.broadcast %cst_40 : f32 to vector<2x96xf32>
    %182 = arith.addf %181, %180 : vector<2x96xf32>
    %183 = arith.divf %181, %182 : vector<2x96xf32>
    %184 = vector.extract_strided_slice %177 {offsets = [0, 96], sizes = [2, 32], strides = [1, 1]} : vector<2x128xf32> to vector<2x32xf32>
    %185 = math.tanh %184 : vector<2x32xf32>
    %186 = vector.extract_strided_slice %183 {offsets = [0, 0], sizes = [2, 32], strides = [1, 1]} : vector<2x96xf32> to vector<2x32xf32>
    %187 = vector.extract_strided_slice %183 {offsets = [0, 32], sizes = [2, 32], strides = [1, 1]} : vector<2x96xf32> to vector<2x32xf32>
    %188 = vector.extract_strided_slice %183 {offsets = [0, 64], sizes = [2, 32], strides = [1, 1]} : vector<2x96xf32> to vector<2x32xf32>
    %189 = arith.mulf %187, %170 : vector<2x32xf32>
    %190 = arith.mulf %186, %185 : vector<2x32xf32>
    %191 = arith.addf %189, %190 : vector<2x32xf32>
    %192 = math.tanh %191 : vector<2x32xf32>
    %193 = arith.mulf %188, %192 : vector<2x32xf32>
    %194 = vector.extract_strided_slice %43 {offsets = [7, 0], sizes = [1, 128], strides = [1, 1]} : vector<16x128xf32> to vector<1x128xf32>
    %195 = vector.extract_strided_slice %43 {offsets = [15, 0], sizes = [1, 128], strides = [1, 1]} : vector<16x128xf32> to vector<1x128xf32>
    %196 = tpu.concatenate %194, %195 in 0 : vector<1x128xf32>, vector<1x128xf32> -> vector<2x128xf32>
    %cst_41 = arith.constant dense<0.000000e+00> : vector<2x128xf32>
    %197 = tpu.matmul %193, %44, %cst_41 {dimension_numbers = #tpu.dot_dimension_numbers<[1], [0], [0], [1], [0, 0, 1, 1], [], []>} : vector<2x32xf32>, vector<32x128xf32>, vector<2x128xf32> -> vector<2x128xf32>
    %198 = arith.addf %196, %197 : vector<2x128xf32>
    %199 = vector.extract_strided_slice %198 {offsets = [0, 0], sizes = [2, 96], strides = [1, 1]} : vector<2x128xf32> to vector<2x96xf32>
    %200 = arith.negf %199 : vector<2x96xf32>
    %201 = math.exp %200 : vector<2x96xf32>
    %cst_42 = arith.constant 1.000000e+00 : f32
    %202 = vector.broadcast %cst_42 : f32 to vector<2x96xf32>
    %203 = arith.addf %202, %201 : vector<2x96xf32>
    %204 = arith.divf %202, %203 : vector<2x96xf32>
    %205 = vector.extract_strided_slice %198 {offsets = [0, 96], sizes = [2, 32], strides = [1, 1]} : vector<2x128xf32> to vector<2x32xf32>
    %206 = math.tanh %205 : vector<2x32xf32>
    %207 = vector.extract_strided_slice %204 {offsets = [0, 0], sizes = [2, 32], strides = [1, 1]} : vector<2x96xf32> to vector<2x32xf32>
    %208 = vector.extract_strided_slice %204 {offsets = [0, 32], sizes = [2, 32], strides = [1, 1]} : vector<2x96xf32> to vector<2x32xf32>
    %209 = vector.extract_strided_slice %204 {offsets = [0, 64], sizes = [2, 32], strides = [1, 1]} : vector<2x96xf32> to vector<2x32xf32>
    %210 = arith.mulf %208, %191 : vector<2x32xf32>
    %211 = arith.mulf %207, %206 : vector<2x32xf32>
    %212 = arith.addf %210, %211 : vector<2x32xf32>
    %213 = math.tanh %212 : vector<2x32xf32>
    %214 = arith.mulf %209, %213 : vector<2x32xf32>
    %215 = arith.truncf %214 : vector<2x32xf32> to vector<2x32xbf16>
    %c416 = arith.constant 416 : index
    %c0_43 = arith.constant 0 : index
    %216 = vector.load %arg4[%c416, %c0_43] : memref<448x128xbf16, #tpu.memory_space<vmem>>, vector<32x128xbf16>
    %cst_44 = arith.constant dense<0.000000e+00> : vector<2x128xf32>
    %217 = tpu.matmul %215, %216, %cst_44 {dimension_numbers = #tpu.dot_dimension_numbers<[1], [0], [0], [1], [0, 0, 1, 1], [], []>} : vector<2x32xbf16>, vector<32x128xbf16>, vector<2x128xf32> -> vector<2x128xf32>
    %c36 = arith.constant 36 : index
    %c0_45 = arith.constant 0 : index
    %218 = vector.load %arg5[%c36, %c0_45] : memref<40x128xf32, #tpu.memory_space<vmem>>, vector<1x128xf32>
    %219 = vector.broadcast %218 : vector<1x128xf32> to vector<2x128xf32>
    %220 = arith.addf %217, %219 : vector<2x128xf32>
    %221 = vector.extract_strided_slice %220 {offsets = [0, 0], sizes = [2, 7], strides = [1, 1]} : vector<2x128xf32> to vector<2x7xf32>
    %222 = vector.extract_strided_slice %220 {offsets = [0, 7], sizes = [2, 1], strides = [1, 1]} : vector<2x128xf32> to vector<2x1xf32>
    %cst_46 = arith.constant dense<0.000000e+00> : vector<2xf32>
    %223 = vector.multi_reduction <add>, %221, %cst_46 [1] : vector<2x7xf32> to vector<2xf32>
    %224 = vector.shape_cast %223 : vector<2xf32> to vector<2x1xf32>
    %cst_47 = arith.constant 7.000000e+00 : f32
    %225 = vector.broadcast %cst_47 : f32 to vector<2x1xf32>
    %226 = arith.divf %224, %225 : vector<2x1xf32>
    %227 = vector.broadcast %226 : vector<2x1xf32> to vector<2x7xf32>
    %228 = arith.subf %221, %227 : vector<2x7xf32>
    %229 = vector.broadcast %222 : vector<2x1xf32> to vector<2x7xf32>
    %230 = arith.addf %229, %228 : vector<2x7xf32>
    %cst_48 = arith.constant 0.000000e+00 : f32
    %231 = vector.broadcast %cst_48 : f32 to vector<2x57xf32>
    %232 = tpu.concatenate %230, %214, %212, %231 in 1 : vector<2x7xf32>, vector<2x32xf32>, vector<2x32xf32>, vector<2x57xf32> -> vector<2x128xf32>
    %c0_49 = arith.constant 0 : index
    %c0_50 = arith.constant 0 : index
    %233 = vector.load %arg6[%c0_49, %c0_50] : memref<2x128xf32, #tpu.memory_space<vmem>>, vector<2x128xf32>
    tpu.vector_store %arg6[%c0_49, %c0_50], %232 {strides = array<i32>} : memref<2x128xf32, #tpu.memory_space<vmem>>, vector<2x128xf32>,
    return
  }
}

</mosaic_0001>

<llo_original>
// kernel: _q_net_forward.1
$region0: #{_q_net_forward.1}
  #allocation0 [shape = 'u32[]', space=smem, size = 0x4, offset = 0x4, fixed_abs, tag = 'smem constant byte address 0x4 - core index']
  #allocation1 [shape = 'u32[144,128]{1,0:T(1,128)}', space=vmem, size = 0x12000, scoped, tag = 'internal scratch']
  %s0 = inlined_call_operand.vmem [shape: f32[16,20], index: 0, kind: input, shape index: {}]
  %s1 = inlined_call_operand.vmem [shape: f32[16,2], index: 1, kind: input, shape index: {}]
  %s2 = inlined_call_operand.vmem [shape: f32[2,32], index: 2, kind: input, shape index: {}]
  %s3 = inlined_call_operand.vmem [shape: f32[2,32], index: 3, kind: input, shape index: {}]
  %s4 = inlined_call_operand.hbm [shape: bf16[448,128], index: 4, kind: input, shape index: {}]
  %s5 = inlined_call_operand.hbm [shape: f32[40,128], index: 5, kind: input, shape index: {}]
  %s6 = inlined_call_operand.vmem [shape: f32[2,128], index: 6, kind: output, shape index: {}]
  %s7 = sld [smem:[#allocation0]]
  $region42: #{_q_net_forward.1} parent=0
    _
  %s9 = ssub.s32 1, %s7
  %s10 = scalar_select 0, %s9, %s7
  $region1: #{_q_net_forward.1} parent=0
    #allocation2 [shape = 'u8[114688]{0}', space=vmem, size = 0x1c000, scoped, tag = 'input window, operand 4, single buffered']
    #allocation3 [shape = 's32[1]{0}', space=sflag, size = 0x4, scoped, tag = 'scoped memory for _q_net_forward.1']
    #allocation4 [shape = 'u8[20480]{0}', space=vmem, size = 0x5000, scoped, tag = 'input window, operand 5, single buffered']
    #allocation5 [shape = 's32[1]{0}', space=sflag, size = 0x4, scoped, tag = 'scoped memory for _q_net_forward.1']
    %11 = vsyncpa [#allocation3], 0
    %12 = vsyncpa [#allocation5], 0
    // Predicated region
    $region2: #{_q_net_forward.1} parent=1 // pred_check
      _
    $region3: #{_q_net_forward.1} parent=1 // pred_check_branch
      %14 = sbr.rel (0) target = $region5
    $region4: #{_q_net_forward.1} parent=1 // pred_region
      _
    $region5: #{_q_net_forward.1} parent=1 // pred_fallthru
      _
    // Predicated region
    $region6: #{_q_net_forward.1} parent=1 // pred_check
      _
    $region7: #{_q_net_forward.1} parent=1 // pred_check_branch
      %16 = sbr.rel (0) target = $region9
    $region8: #{_q_net_forward.1} parent=1 // pred_region
      _
    $region9: #{_q_net_forward.1} parent=1 // pred_fallthru
      _
    // Predicated region
    $region10: #{_q_net_forward.1} parent=1 // pred_check
      _
    $region11: #{_q_net_forward.1} parent=1 // pred_check_branch
      %18 = sbr.rel (0) target = $region13
    $region12: #{_q_net_forward.1} parent=1 // pred_region
      _
    $region13: #{_q_net_forward.1} parent=1 // pred_fallthru
      _
    // Predicated region
    $region14: #{_q_net_forward.1} parent=1 // pred_check
      _
    $region15: #{_q_net_forward.1} parent=1 // pred_check_branch
      %20 = sbr.rel (0) target = $region17
    $region16: #{_q_net_forward.1} parent=1 // pred_region
      _
    $region17: #{_q_net_forward.1} parent=1 // pred_fallthru
      _
    // Predicated region
    $region18: #{_q_net_forward.1} parent=1 // pred_check
      _
    $region19: #{_q_net_forward.1} parent=1 // pred_check_branch
      %22 = sbr.rel (0) target = $region21
    $region20: #{_q_net_forward.1} parent=1 // pred_region
      %s24 = ssub.s32 3584, 3584
      %25 = vsyncadd [#allocation3], %s24
      %s26 = sshll.u32 [#allocation2], 4
      %s27 = int_to_ptr.vmem [resolvable:$true] %s26
      %32 = dma.hbm_to_vmem [thread:$0]  %s4, 3584, %s27, [#allocation3], 64, 64, 4
    $region21: #{_q_net_forward.1} parent=1 // pred_fallthru
      _
    // Predicated region
    $region22: #{_q_net_forward.1} parent=1 // pred_check
      _
    $region23: #{_q_net_forward.1} parent=1 // pred_check_branch
      %34 = sbr.rel (0) target = $region25
    $region24: #{_q_net_forward.1} parent=1 // pred_region
      %s36 = ssub.s32 640, 640
      %37 = vsyncadd [#allocation5], %s36
      %s38 = sshll.u32 [#allocation4], 4
      %s39 = int_to_ptr.vmem [resolvable:$true] %s38
      %44 = dma.hbm_to_vmem [thread:$0]  %s5, 640, %s39, [#allocation5], 128, 128, 8
    $region25: #{_q_net_forward.1} parent=1 // pred_fallthru
      _
    // Predicated region
    $region26: #{_q_net_forward.1} parent=1 // pred_check
      _
    $region27: #{_q_net_forward.1} parent=1 // pred_check_branch
      %46 = sbr.rel (0) target = $region29
    $region28: #{_q_net_forward.1} parent=1 // pred_region
      %47 = dma.done [#allocation3], 3584
    $region29: #{_q_net_forward.1} parent=1 // pred_fallthru
      _
    // Predicated region
    $region30: #{_q_net_forward.1} parent=1 // pred_check
      _
    $region31: #{_q_net_forward.1} parent=1 // pred_check_branch
      %49 = sbr.rel (0) target = $region33
    $region32: #{_q_net_forward.1} parent=1 // pred_region
      %50 = dma.done [#allocation5], 640
    $region33: #{_q_net_forward.1} parent=1 // pred_fallthru
      _
    %v52 = vld [vmem:[%s0] sm:$0xff]
    %v53 = vld [vmem:[%s0 + $0x8] sm:$0xff]
    %v54 = vld [vmem:[%s1] sm:$0xff]
    %v55 = vld [vmem:[%s1 + $0x8] sm:$0xff]
    %v56 = vpack.c.bf16 %v53, %v52
    %v57 = vld [vmem:[#allocation2] sm:$0xf]
    %v58 = vld [vmem:[#allocation2 + $0x4] sm:$0xf]
    %v59 = vld [vmem:[#allocation2 + $0x8] sm:$0x3]
    %v60 = vld [vmem:[#allocation4 + $0x25] sm:$0x1]
    %62 = vset.pattern.permute.xlu0 0
    %63 = vperm.xlu0 %62, %v54
    %v64 = vpop.permute.xlu0 %63
    %67 = vset.pattern.permute.xlu0 0
    %68 = vperm.xlu0 %67, %v55
    %v69 = vpop.permute.xlu0 %68
    %v71 = vlaneseq
    %v72 = vshrl.u32 %v71, 7
    %v73 = vsub.s32 0, %v72
    %v74 = vrot.slane %v60, %v73
    %v75 = vmul.f32 %v64, %v74
    %v76 = vmul.f32 %v69, %v74
    %v80 = vunpack.c.l.b16 %v57
    %v81 = vunpack.c.l.b16 %v58
    %v82 = vunpack.c.l.b16 %v59
    %v83 = vpack.c.b16 %v81, %v80
    %v84 = vpack.c.b16 %v82, %v82
    %vm86 = vcmask 162816
    %v88 = vsel %vm86, %v56, 0
    %vm90 = vcmask 1041408
    %v92 = vsel %vm90, %v84, 0
    %94 = vmatprep.subr.bf16.mxu0 0
    %95 = vmatpush1.bf16.msra.mxu0 0
    %96 = vmatprep.subr.bf16.mxu0 0
    %97 = vmatpush1.bf16.msra.mxu0 0
    %98 = vmatprep.subr.bf16.mxu0 0
    %99 = vmatpush1.bf16.msra.mxu0 0
    %100 = vmatprep.subr.bf16.mxu0 0
    %101 = vmatpush1.bf16.msra.mxu0 0
    %102 = vmatprep.subr.bf16.mxu0 0
    %103 = vmatpush1.bf16.msra.mxu0 0
    %104 = vmatprep.subr.bf16.mxu0 0
    %105 = vmatpush1.bf16.msra.mxu0 0
    %106 = vmatprep.subr.bf16.mxu0 0
    %107 = vmatpush1.bf16.msra.mxu0 %v92
    %108 = vmatprep.subr.bf16.mxu0 0
    %109 = vmatpush1.bf16.msra.mxu0 %v83
    %110 = vmatprep.subr.bf16.mxu0 0
    %111 = vmatpush2.bf16.msra.mxu0 0
    %112 = vmatprep.subr.bf16.mxu0 0
    %113 = vmatpush2.bf16.msra.mxu0 0
    %114 = vmatprep.subr.bf16.mxu0 0
    %115 = vmatpush2.bf16.msra.mxu0 0
    %116 = vmatprep.subr.bf16.mxu0 0
    %117 = vmatpush2.bf16.msra.mxu0 0
    %118 = vmatprep.subr.bf16.mxu0 0
    %119 = vmatpush2.bf16.msra.mxu0 0
    %120 = vmatprep.subr.bf16.mxu0 0
    %121 = vmatpush2.bf16.msra.mxu0 0
    %122 = vmatprep.subr.bf16.mxu0 0
    %123 = vmatpush2.bf16.msra.mxu0 0
    %124 = vmatprep.subr.bf16.mxu0 0
    %125 = vmatpush2.bf16.msra.mxu0 0
    %126 = vmatprep.mubr.bf16.mxu0 0
    %127 = vmatmul.mubr.bf16.gmra.mxu0 %v88
    %v128 = vpop.f32.mrf.mxu0
    %v129 = vadd.f32 %v75, %v128
    %v130 = vpop.f32.mrf.mxu0
    %v131 = vpop.f32.mrf.mxu0
    %v132 = vadd.f32 %v76, %v131
    %v133 = vpop.f32.mrf.mxu0
    %134 = vdwg.mxu0
    %v135 = vld [vmem:[#allocation4 + $0x26] sm:$0x1]
    %136 = vset.pattern.permute.xlu0 1
    %137 = vperm.xlu0 %136, %v54
    %v138 = vpop.permute.xlu0 %137
    %140 = vset.pattern.permute.xlu0 1
    %141 = vperm.xlu0 %140, %v55
    %v142 = vpop.permute.xlu0 %141
    %v144 = vlaneseq
    %v145 = vshrl.u32 %v144, 7
    %v146 = vsub.s32 0, %v145
    %v147 = vrot.slane %v135, %v146
    %v148 = vmul.f32 %v138, %v147
    %v149 = vmul.f32 %v142, %v147
    %v150 = vadd.f32 %v129, %v148
    %v151 = vadd.f32 %v132, %v149
    %v152 = vld [vmem:[#allocation4 + $0x20] sm:$0x1]
    %v153 = vlaneseq
    %v154 = vshrl.u32 %v153, 7
    %v155 = vsub.s32 0, %v154
    %v156 = vrot.slane %v152, %v155
    %v157 = vadd.f32 %v150, %v156
    %v158 = vadd.f32 %v151, %v156
    %v159 = vmax.f32 %v157, 0.0
    %v160 = vmax.f32 %v158, 0.0
    %v161 = vpack.c.bf16 %v160, %v159
    %v162 = vld [vmem:[#allocation2 + $0x10] sm:$0xf]
    %v163 = vld [vmem:[#allocation2 + $0x14] sm:$0xf]
    %v164 = vld [vmem:[#allocation2 + $0x18] sm:$0xf]
    %v165 = vld [vmem:[#allocation2 + $0x1c] sm:$0xf]
    %v166 = vld [vmem:[#allocation2 + $0x20] sm:$0xf]
    %v167 = vld [vmem:[#allocation2 + $0x24] sm:$0xf]
    %v168 = vld [vmem:[#allocation2 + $0x28] sm:$0xf]
    %v169 = vld [vmem:[#allocation2 + $0x2c] sm:$0xf]
    %v170 = vld [vmem:[#allocation2 + $0x30] sm:$0xf]
    %v171 = vld [vmem:[#allocation2 + $0x34] sm:$0xf]
    %v172 = vld [vmem:[#allocation2 + $0x38] sm:$0xf]
    %v173 = vld [vmem:[#allocation2 + $0x3c] sm:$0xf]
    %v174 = vld [vmem:[#allocation2 + $0x40] sm:$0xf]
    %v175 = vld [vmem:[#allocation2 + $0x44] sm:$0xf]
    %v176 = vld [vmem:[#allocation2 + $0x48] sm:$0xf]
    %v177 = vld [vmem:[#allocation2 + $0x4c] sm:$0xf]
    %v178 = vld [vmem:[#allocation4 + $0x21] sm:$0x1]
    %v179 = vlaneseq
    %v180 = vshrl.u32 %v179, 7
    %v181 = vsub.s32 0, %v180
    %v182 = vrot.slane %v178, %v181
    %v199 = vunpack.c.l.b16 %v162
    %v200 = vunpack.c.l.b16 %v163
    %v201 = vunpack.c.l.b16 %v164
    %v202 = vunpack.c.l.b16 %v165
    %v203 = vunpack.c.l.b16 %v166
    %v204 = vunpack.c.l.b16 %v167
    %v205 = vunpack.c.l.b16 %v168
    %v206 = vunpack.c.l.b16 %v169
    %v207 = vunpack.c.l.b16 %v170
    %v208 = vunpack.c.l.b16 %v171
    %v209 = vunpack.c.l.b16 %v172
    %v210 = vunpack.c.l.b16 %v173
    %v211 = vunpack.c.l.b16 %v174
    %v212 = vunpack.c.l.b16 %v175
    %v213 = vunpack.c.l.b16 %v176
    %v214 = vunpack.c.l.b16 %v177
    %v215 = vpack.c.b16 %v200, %v199
    %v216 = vpack.c.b16 %v202, %v201
    %v217 = vpack.c.b16 %v204, %v203
    %v218 = vpack.c.b16 %v206, %v205
    %v219 = vpack.c.b16 %v208, %v207
    %v220 = vpack.c.b16 %v210, %v209
    %v221 = vpack.c.b16 %v212, %v211
    %v222 = vpack.c.b16 %v214, %v213
    %231 = vmatprep.subr.bf16.mxu0 0
    %232 = vmatpush1.bf16.msra.mxu0 %v222
    %233 = vmatprep.subr.bf16.mxu0 0
    %234 = vmatpush1.bf16.msra.mxu0 %v221
    %235 = vmatprep.subr.bf16.mxu0 0
    %236 = vmatpush1.bf16.msra.mxu0 %v220
    %237 = vmatprep.subr.bf16.mxu0 0
    %238 = vmatpush1.bf16.msra.mxu0 %v219
    %239 = vmatprep.subr.bf16.mxu0 0
    %240 = vmatpush1.bf16.msra.mxu0 %v218
    %241 = vmatprep.subr.bf16.mxu0 0
    %242 = vmatpush1.bf16.msra.mxu0 %v217
    %243 = vmatprep.subr.bf16.mxu0 0
    %244 = vmatpush1.bf16.msra.mxu0 %v216
    %245 = vmatprep.subr.bf16.mxu0 0
    %246 = vmatpush1.bf16.msra.mxu0 %v215
    %247 = vmatprep.subr.bf16.mxu0 0
    %248 = vmatpush2.bf16.msra.mxu0 0
    %249 = vmatprep.subr.bf16.mxu0 0
    %250 = vmatpush2.bf16.msra.mxu0 0
    %251 = vmatprep.subr.bf16.mxu0 0
    %252 = vmatpush2.bf16.msra.mxu0 0
    %253 = vmatprep.subr.bf16.mxu0 0
    %254 = vmatpush2.bf16.msra.mxu0 0
    %255 = vmatprep.subr.bf16.mxu0 0
    %256 = vmatpush2.bf16.msra.mxu0 0
    %257 = vmatprep.subr.bf16.mxu0 0
    %258 = vmatpush2.bf16.msra.mxu0 0
    %259 = vmatprep.subr.bf16.mxu0 0
    %260 = vmatpush2.bf16.msra.mxu0 0
    %261 = vmatprep.subr.bf16.mxu0 0
    %262 = vmatpush2.bf16.msra.mxu0 0
    %263 = vmatprep.mubr.bf16.mxu0 0
    %264 = vmatmul.mubr.bf16.gmra.mxu0 %v161
    %v265 = vpop.f32.mrf.mxu0
    %v266 = vadd.f32 %v182, %v265
    %v267 = vpop.f32.mrf.mxu0
    %v268 = vpop.f32.mrf.mxu0
    %v269 = vadd.f32 %v182, %v268
    %v270 = vpop.f32.mrf.mxu0
    %271 = vdwg.mxu0
    %v272 = vmax.f32 %v266, 0.0
    %v273 = vmax.f32 %v269, 0.0
    %v274 = vpack.c.bf16 %v273, %v272
    %v275 = vld [vmem:[#allocation2 + $0x50] sm:$0xf]
    %v276 = vld [vmem:[#allocation2 + $0x54] sm:$0xf]
    %v277 = vld [vmem:[#allocation2 + $0x58] sm:$0xf]
    %v278 = vld [vmem:[#allocation2 + $0x5c] sm:$0xf]
    %v279 = vld [vmem:[#allocation2 + $0x60] sm:$0xf]
    %v280 = vld [vmem:[#allocation2 + $0x64] sm:$0xf]
    %v281 = vld [vmem:[#allocation2 + $0x68] sm:$0xf]
    %v282 = vld [vmem:[#allocation2 + $0x6c] sm:$0xf]
    %v283 = vld [vmem:[#allocation2 + $0x70] sm:$0xf]
    %v284 = vld [vmem:[#allocation2 + $0x74] sm:$0xf]
    %v285 = vld [vmem:[#allocation2 + $0x78] sm:$0xf]
    %v286 = vld [vmem:[#allocation2 + $0x7c] sm:$0xf]
    %v287 = vld [vmem:[#allocation2 + $0x80] sm:$0xf]
    %v288 = vld [vmem:[#allocation2 + $0x84] sm:$0xf]
    %v289 = vld [vmem:[#allocation2 + $0x88] sm:$0xf]
    %v290 = vld [vmem:[#allocation2 + $0x8c] sm:$0xf]
    %v291 = vld [vmem:[#allocation4 + $0x22] sm:$0x1]
    %v292 = vlaneseq
    %v293 = vshrl.u32 %v292, 7
    %v294 = vsub.s32 0, %v293
    %v295 = vrot.slane %v291, %v294
    %v312 = vunpack.c.l.b16 %v275
    %v313 = vunpack.c.l.b16 %v276
    %v314 = vunpack.c.l.b16 %v277
    %v315 = vunpack.c.l.b16 %v278
    %v316 = vunpack.c.l.b16 %v279
    %v317 = vunpack.c.l.b16 %v280
    %v318 = vunpack.c.l.b16 %v281
    %v319 = vunpack.c.l.b16 %v282
    %v320 = vunpack.c.l.b16 %v283
    %v321 = vunpack.c.l.b16 %v284
    %v322 = vunpack.c.l.b16 %v285
    %v323 = vunpack.c.l.b16 %v286
    %v324 = vunpack.c.l.b16 %v287
    %v325 = vunpack.c.l.b16 %v288
    %v326 = vunpack.c.l.b16 %v289
    %v327 = vunpack.c.l.b16 %v290
    %v328 = vpack.c.b16 %v313, %v312
    %v329 = vpack.c.b16 %v315, %v314
    %v330 = vpack.c.b16 %v317, %v316
    %v331 = vpack.c.b16 %v319, %v318
    %v332 = vpack.c.b16 %v321, %v320
    %v333 = vpack.c.b16 %v323, %v322
    %v334 = vpack.c.b16 %v325, %v324
    %v335 = vpack.c.b16 %v327, %v326
    %344 = vmatprep.subr.bf16.mxu0 0
    %345 = vmatpush1.bf16.msra.mxu0 %v335
    %346 = vmatprep.subr.bf16.mxu0 0
    %347 = vmatpush1.bf16.msra.mxu0 %v334
    %348 = vmatprep.subr.bf16.mxu0 0
    %349 = vmatpush1.bf16.msra.mxu0 %v333
    %350 = vmatprep.subr.bf16.mxu0 0
    %351 = vmatpush1.bf16.msra.mxu0 %v332
    %352 = vmatprep.subr.bf16.mxu0 0
    %353 = vmatpush1.bf16.msra.mxu0 %v331
    %354 = vmatprep.subr.bf16.mxu0 0
    %355 = vmatpush1.bf16.msra.mxu0 %v330
    %356 = vmatprep.subr.bf16.mxu0 0
    %357 = vmatpush1.bf16.msra.mxu0 %v329
    %358 = vmatprep.subr.bf16.mxu0 0
    %359 = vmatpush1.bf16.msra.mxu0 %v328
    %360 = vmatprep.subr.bf16.mxu0 0
    %361 = vmatpush2.bf16.msra.mxu0 0
    %362 = vmatprep.subr.bf16.mxu0 0
    %363 = vmatpush2.bf16.msra.mxu0 0
    %364 = vmatprep.subr.bf16.mxu0 0
    %365 = vmatpush2.bf16.msra.mxu0 0
    %366 = vmatprep.subr.bf16.mxu0 0
    %367 = vmatpush2.bf16.msra.mxu0 0
    %368 = vmatprep.subr.bf16.mxu0 0
    %369 = vmatpush2.bf16.msra.mxu0 0
    %370 = vmatprep.subr.bf16.mxu0 0
    %371 = vmatpush2.bf16.msra.mxu0 0
    %372 = vmatprep.subr.bf16.mxu0 0
    %373 = vmatpush2.bf16.msra.mxu0 0
    %374 = vmatprep.subr.bf16.mxu0 0
    %375 = vmatpush2.bf16.msra.mxu0 0
    %376 = vmatprep.mubr.bf16.mxu0 0
    %377 = vmatmul.mubr.bf16.gmra.mxu0 %v274
    %v378 = vpop.f32.mrf.mxu0
    %v379 = vadd.f32 %v295, %v378
    %v380 = vpop.f32.mrf.mxu0
    %v381 = vpop.f32.mrf.mxu0
    %v382 = vadd.f32 %v295, %v381
    %v383 = vpop.f32.mrf.mxu0
    %384 = vdwg.mxu0
    %v385 = vmax.f32 %v379, 0.0
    %v386 = vmax.f32 %v382, 0.0
    %v387 = vpack.c.bf16 %v386, %v385
    %v388 = vld [vmem:[#allocation2 + $0x90] sm:$0xf]
    %v389 = vld [vmem:[#allocation2 + $0x94] sm:$0xf]
    %v390 = vld [vmem:[#allocation2 + $0x98] sm:$0xf]
    %v391 = vld [vmem:[#allocation2 + $0x9c] sm:$0xf]
    %v392 = vld [vmem:[#allocation2 + $0xa0] sm:$0xf]
    %v393 = vld [vmem:[#allocation2 + $0xa4] sm:$0xf]
    %v394 = vld [vmem:[#allocation2 + $0xa8] sm:$0xf]
    %v395 = vld [vmem:[#allocation2 + $0xac] sm:$0xf]
    %v396 = vld [vmem:[#allocation2 + $0xb0] sm:$0xf]
    %v397 = vld [vmem:[#allocation2 + $0xb4] sm:$0xf]
    %v398 = vld [vmem:[#allocation2 + $0xb8] sm:$0xf]
    %v399 = vld [vmem:[#allocation2 + $0xbc] sm:$0xf]
    %v400 = vld [vmem:[#allocation2 + $0xc0] sm:$0xf]
    %v401 = vld [vmem:[#allocation2 + $0xc4] sm:$0xf]
    %v402 = vld [vmem:[#allocation2 + $0xc8] sm:$0xf]
    %v403 = vld [vmem:[#allocation2 + $0xcc] sm:$0xf]
    %v404 = vld [vmem:[#allocation4 + $0x23] sm:$0x1]
    %v405 = vlaneseq
    %v406 = vshrl.u32 %v405, 7
    %v407 = vsub.s32 0, %v406
    %v408 = vrot.slane %v404, %v407
    %v425 = vunpack.c.l.b16 %v388
    %v426 = vunpack.c.l.b16 %v389
    %v427 = vunpack.c.l.b16 %v390
    %v428 = vunpack.c.l.b16 %v391
    %v429 = vunpack.c.l.b16 %v392
    %v430 = vunpack.c.l.b16 %v393
    %v431 = vunpack.c.l.b16 %v394
    %v432 = vunpack.c.l.b16 %v395
    %v433 = vunpack.c.l.b16 %v396
    %v434 = vunpack.c.l.b16 %v397
    %v435 = vunpack.c.l.b16 %v398
    %v436 = vunpack.c.l.b16 %v399
    %v437 = vunpack.c.l.b16 %v400
    %v438 = vunpack.c.l.b16 %v401
    %v439 = vunpack.c.l.b16 %v402
    %v440 = vunpack.c.l.b16 %v403
    %v441 = vpack.c.b16 %v426, %v425
    %v442 = vpack.c.b16 %v428, %v427
    %v443 = vpack.c.b16 %v430, %v429
    %v444 = vpack.c.b16 %v432, %v431
    %v445 = vpack.c.b16 %v434, %v433
    %v446 = vpack.c.b16 %v436, %v435
    %v447 = vpack.c.b16 %v438, %v437
    %v448 = vpack.c.b16 %v440, %v439
    %457 = vmatprep.subr.bf16.mxu0 0
    %458 = vmatpush1.bf16.msra.mxu0 %v448
    %459 = vmatprep.subr.bf16.mxu0 0
    %460 = vmatpush1.bf16.msra.mxu0 %v447
    %461 = vmatprep.subr.bf16.mxu0 0
    %462 = vmatpush1.bf16.msra.mxu0 %v446
    %463 = vmatprep.subr.bf16.mxu0 0
    %464 = vmatpush1.bf16.msra.mxu0 %v445
    %465 = vmatprep.subr.bf16.mxu0 0
    %466 = vmatpush1.bf16.msra.mxu0 %v444
    %467 = vmatprep.subr.bf16.mxu0 0
    %468 = vmatpush1.bf16.msra.mxu0 %v443
    %469 = vmatprep.subr.bf16.mxu0 0
    %470 = vmatpush1.bf16.msra.mxu0 %v442
    %471 = vmatprep.subr.bf16.mxu0 0
    %472 = vmatpush1.bf16.msra.mxu0 %v441
    %473 = vmatprep.subr.bf16.mxu0 0
    %474 = vmatpush2.bf16.msra.mxu0 0
    %475 = vmatprep.subr.bf16.mxu0 0
    %476 = vmatpush2.bf16.msra.mxu0 0
    %477 = vmatprep.subr.bf16.mxu0 0
    %478 = vmatpush2.bf16.msra.mxu0 0
    %479 = vmatprep.subr.bf16.mxu0 0
    %480 = vmatpush2.bf16.msra.mxu0 0
    %481 = vmatprep.subr.bf16.mxu0 0
    %482 = vmatpush2.bf16.msra.mxu0 0
    %483 = vmatprep.subr.bf16.mxu0 0
    %484 = vmatpush2.bf16.msra.mxu0 0
    %485 = vmatprep.subr.bf16.mxu0 0
    %486 = vmatpush2.bf16.msra.mxu0 0
    %487 = vmatprep.subr.bf16.mxu0 0
    %488 = vmatpush2.bf16.msra.mxu0 0
    %489 = vmatprep.mubr.bf16.mxu0 0
    %490 = vmatmul.mubr.bf16.gmra.mxu0 %v387
    %v491 = vpop.f32.mrf.mxu0
    %v492 = vadd.f32 %v408, %v491
    %v493 = vpop.f32.mrf.mxu0
    %v494 = vpop.f32.mrf.mxu0
    %v495 = vadd.f32 %v408, %v494
    %v496 = vpop.f32.mrf.mxu0
    %497 = vdwg.mxu0
    %v498 = vld [vmem:[#allocation4] sm:$0xff]
    %v499 = vld [vmem:[#allocation4 + $0x8] sm:$0xff]
    %v500 = vld [vmem:[#allocation4 + $0x10] sm:$0xff]
    %v501 = vld [vmem:[#allocation4 + $0x18] sm:$0xff]
    %v502 = vld [vmem:[%s2] sm:$0x3]
    %v503 = vld [vmem:[%s3] sm:$0x3]
    %v505 = vrot.slane %v495, 7
    %vm507 = vcmask 1040384
    %v508 = vsel %vm507, %v492, %v505
    %vm509 = vcmask 261120
    %v511 = vsel %vm509, %v502, 0
    %513 = vmatprep.subr.mxu0 0.0
    %514 = vmatpush1.msra.mxu0 0.0
    %515 = vmatprep.subr.mxu0 0.0
    %516 = vmatpush1.msra.mxu0 0.0
    %517 = vmatprep.subr.mxu0 0.0
    %518 = vmatpush1.msra.mxu0 0.0
    %519 = vmatprep.subr.mxu0 0.0
    %520 = vmatpush1.msra.mxu0 0.0
    %521 = vmatprep.subr.mxu0 0.0
    %522 = vmatpush1.msra.mxu0 0.0
    %523 = vmatprep.subr.mxu0 0.0
    %524 = vmatpush1.msra.mxu0 0.0
    %525 = vmatprep.subr.mxu0 0.0
    %526 = vmatpush1.msra.mxu0 0.0
    %527 = vmatprep.subr.mxu0 0.0
    %528 = vmatpush1.msra.mxu0 0.0
    %529 = vmatprep.subr.mxu0 0.0
    %530 = vmatpush1.msra.mxu0 0.0
    %531 = vmatprep.subr.mxu0 0.0
    %532 = vmatpush1.msra.mxu0 0.0
    %533 = vmatprep.subr.mxu0 0.0
    %534 = vmatpush1.msra.mxu0 0.0
    %535 = vmatprep.subr.mxu0 0.0
    %536 = vmatpush1.msra.mxu0 0.0
    %537 = vmatprep.subr.mxu0 0.0
    %538 = vmatpush1.msra.mxu0 %v501
    %539 = vmatprep.subr.mxu0 0.0
    %540 = vmatpush1.msra.mxu0 %v500
    %541 = vmatprep.subr.mxu0 0.0
    %542 = vmatpush1.msra.mxu0 %v499
    %543 = vmatprep.subr.mxu0 0.0
    %544 = vmatpush1.msra.mxu0 %v498
    %545 = vmatprep.subr.mxu0 0.0
    %546 = vmatpush2.msra.mxu0 0.0
    %547 = vmatprep.subr.mxu0 0.0
    %548 = vmatpush2.msra.mxu0 0.0
    %549 = vmatprep.subr.mxu0 0.0
    %550 = vmatpush2.msra.mxu0 0.0
    %551 = vmatprep.subr.mxu0 0.0
    %552 = vmatpush2.msra.mxu0 0.0
    %553 = vmatprep.subr.mxu0 0.0
    %554 = vmatpush2.msra.mxu0 0.0
    %555 = vmatprep.subr.mxu0 0.0
    %556 = vmatpush2.msra.mxu0 0.0
    %557 = vmatprep.subr.mxu0 0.0
    %558 = vmatpush2.msra.mxu0 0.0
    %559 = vmatprep.subr.mxu0 0.0
    %560 = vmatpush2.msra.mxu0 0.0
    %561 = vmatprep.subr.mxu0 0.0
    %562 = vmatpush2.msra.mxu0 0.0
    %563 = vmatprep.subr.mxu0 0.0
    %564 = vmatpush2.msra.mxu0 0.0
    %565 = vmatprep.subr.mxu0 0.0
    %566 = vmatpush2.msra.mxu0 0.0
    %567 = vmatprep.subr.mxu0 0.0
    %568 = vmatpush2.msra.mxu0 0.0
    %569 = vmatprep.subr.mxu0 0.0
    %570 = vmatpush2.msra.mxu0 0.0
    %571 = vmatprep.subr.mxu0 0.0
    %572 = vmatpush2.msra.mxu0 0.0
    %573 = vmatprep.subr.mxu0 0.0
    %574 = vmatpush2.msra.mxu0 0.0
    %575 = vmatprep.subr.mxu0 0.0
    %576 = vmatpush2.msra.mxu0 0.0
    %577 = vmatprep.mubr.f32.mxu0 0.0
    %578 = vmatmul.mubr.f32.gmra.mxu0 %v511
    %v579 = vpop.f32.mrf.mxu0
    %v580 = vadd.f32 0.0, %v579
    %v581 = vpop.f32.mrf.mxu0
    %582 = vdwg.mxu0
    %v583 = vadd.f32 %v508, %v580
    %v584 = vxor.u32 %v583, 2147483648
    %v585 = vmul.f32 %v584, 1.442695
    %v586 = vpow.pop %v585
    %v587 = vadd.f32 %v586, 1.0
    %v588 = vrcp.pop %v587
    %v589 = vmul.f32 1.0, %v588
    %v590 = vtanh.pop %v583
    %592 = vrot.lane.b32.xlu0 %v503, 32
    %v593 = vpop.permute.xlu0 %592
    %v595 = vmul.f32 %v589, %v593
    %597 = vrot.lane.b32.xlu0 %v590, 32
    %v598 = vpop.permute.xlu0 %597
    %v600 = vmul.f32 %v589, %v598
    %602 = vrot.lane.b32.xlu0 %v600, 32
    %v603 = vpop.permute.xlu0 %602
    %v605 = vadd.f32 %v595, %v603
    %v606 = vtanh.pop %v605
    %608 = vrot.lane.b32.xlu0 %v606, 32
    %v609 = vpop.permute.xlu0 %608
    %v611 = vmul.f32 %v589, %v609
    %v613 = vrot.slane %v492, 1
    %v615 = vsel %vm507, %v613, %v495
    %617 = vrot.lane.b32.xlu0 %v611, 64
    %v618 = vpop.permute.xlu0 %617
    %v619 = vsel %vm509, %v618, 0
    %621 = vmatprep.subr.mxu0 0.0
    %622 = vmatpush1.msra.mxu0 0.0
    %623 = vmatprep.subr.mxu0 0.0
    %624 = vmatpush1.msra.mxu0 0.0
    %625 = vmatprep.subr.mxu0 0.0
    %626 = vmatpush1.msra.mxu0 0.0
    %627 = vmatprep.subr.mxu0 0.0
    %628 = vmatpush1.msra.mxu0 0.0
    %629 = vmatprep.subr.mxu0 0.0
    %630 = vmatpush1.msra.mxu0 0.0
    %631 = vmatprep.subr.mxu0 0.0
    %632 = vmatpush1.msra.mxu0 0.0
    %633 = vmatprep.subr.mxu0 0.0
    %634 = vmatpush1.msra.mxu0 0.0
    %635 = vmatprep.subr.mxu0 0.0
    %636 = vmatpush1.msra.mxu0 0.0
    %637 = vmatprep.subr.mxu0 0.0
    %638 = vmatpush1.msra.mxu0 0.0
    %639 = vmatprep.subr.mxu0 0.0
    %640 = vmatpush1.msra.mxu0 0.0
    %641 = vmatprep.subr.mxu0 0.0
    %642 = vmatpush1.msra.mxu0 0.0
    %643 = vmatprep.subr.mxu0 0.0
    %644 = vmatpush1.msra.mxu0 0.0
    %645 = vmatprep.subr.mxu0 0.0
    %646 = vmatpush1.msra.mxu0 %v501
    %647 = vmatprep.subr.mxu0 0.0
    %648 = vmatpush1.msra.mxu0 %v500
    %649 = vmatprep.subr.mxu0 0.0
    %650 = vmatpush1.msra.mxu0 %v499
    %651 = vmatprep.subr.mxu0 0.0
    %652 = vmatpush1.msra.mxu0 %v498
    %653 = vmatprep.subr.mxu0 0.0
    %654 = vmatpush2.msra.mxu0 0.0
    %655 = vmatprep.subr.mxu0 0.0
    %656 = vmatpush2.msra.mxu0 0.0
    %657 = vmatprep.subr.mxu0 0.0
    %658 = vmatpush2.msra.mxu0 0.0
    %659 = vmatprep.subr.mxu0 0.0
    %660 = vmatpush2.msra.mxu0 0.0
    %661 = vmatprep.subr.mxu0 0.0
    %662 = vmatpush2.msra.mxu0 0.0
    %663 = vmatprep.subr.mxu0 0.0
    %664 = vmatpush2.msra.mxu0 0.0
    %665 = vmatprep.subr.mxu0 0.0
    %666 = vmatpush2.msra.mxu0 0.0
    %667 = vmatprep.subr.mxu0 0.0
    %668 = vmatpush2.msra.mxu0 0.0
    %669 = vmatprep.subr.mxu0 0.0
    %670 = vmatpush2.msra.mxu0 0.0
    %671 = vmatprep.subr.mxu0 0.0
    %672 = vmatpush2.msra.mxu0 0.0
    %673 = vmatprep.subr.mxu0 0.0
    %674 = vmatpush2.msra.mxu0 0.0
    %675 = vmatprep.subr.mxu0 0.0
    %676 = vmatpush2.msra.mxu0 0.0
    %677 = vmatprep.subr.mxu0 0.0
    %678 = vmatpush2.msra.mxu0 0.0
    %679 = vmatprep.subr.mxu0 0.0
    %680 = vmatpush2.msra.mxu0 0.0
    %681 = vmatprep.subr.mxu0 0.0
    %682 = vmatpush2.msra.mxu0 0.0
    %683 = vmatprep.subr.mxu0 0.0
    %684 = vmatpush2.msra.mxu0 0.0
    %685 = vmatprep.mubr.f32.mxu0 0.0
    %686 = vmatmul.mubr.f32.gmra.mxu0 %v619
    %v687 = vpop.f32.mrf.mxu0
    %v688 = vadd.f32 0.0, %v687
    %v689 = vpop.f32.mrf.mxu0
    %690 = vdwg.mxu0
    %v691 = vadd.f32 %v615, %v688
    %v692 = vxor.u32 %v691, 2147483648
    %v693 = vmul.f32 %v692, 1.442695
    %v694 = vpow.pop %v693
    %v695 = vadd.f32 %v694, 1.0
    %v696 = vrcp.pop %v695
    %v697 = vmul.f32 1.0, %v696
    %v698 = vtanh.pop %v691
    %v699 = vmul.f32 %v697, %v605
    %701 = vrot.lane.b32.xlu0 %v698, 32
    %v702 = vpop.permute.xlu0 %701
    %v704 = vmul.f32 %v697, %v702
    %706 = vrot.lane.b32.xlu0 %v704, 32
    %v707 = vpop.permute.xlu0 %706
    %v709 = vadd.f32 %v699, %v707
    %v710 = vtanh.pop %v709
    %712 = vrot.lane.b32.xlu0 %v710, 32
    %v713 = vpop.permute.xlu0 %712
    %v715 = vmul.f32 %v697, %v713
    %v716 = vrot.slane %v492, 2
    %v718 = vrot.slane %v495, 1
    %v720 = vsel %vm507, %v716, %v718
    %722 = vrot.lane.b32.xlu0 %v715, 64
    %v723 = vpop.permute.xlu0 %722
    %v724 = vsel %vm509, %v723, 0
    %726 = vmatprep.subr.mxu0 0.0
    %727 = vmatpush1.msra.mxu0 0.0
    %728 = vmatprep.subr.mxu0 0.0
    %729 = vmatpush1.msra.mxu0 0.0
    %730 = vmatprep.subr.mxu0 0.0
    %731 = vmatpush1.msra.mxu0 0.0
    %732 = vmatprep.subr.mxu0 0.0
    %733 = vmatpush1.msra.mxu0 0.0
    %734 = vmatprep.subr.mxu0 0.0
    %735 = vmatpush1.msra.mxu0 0.0
    %736 = vmatprep.subr.mxu0 0.0
    %737 = vmatpush1.msra.mxu0 0.0
    %738 = vmatprep.subr.mxu0 0.0
    %739 = vmatpush1.msra.mxu0 0.0
    %740 = vmatprep.subr.mxu0 0.0
    %741 = vmatpush1.msra.mxu0 0.0
    %742 = vmatprep.subr.mxu0 0.0
    %743 = vmatpush1.msra.mxu0 0.0
    %744 = vmatprep.subr.mxu0 0.0
    %745 = vmatpush1.msra.mxu0 0.0
    %746 = vmatprep.subr.mxu0 0.0
    %747 = vmatpush1.msra.mxu0 0.0
    %748 = vmatprep.subr.mxu0 0.0
    %749 = vmatpush1.msra.mxu0 0.0
    %750 = vmatprep.subr.mxu0 0.0
    %751 = vmatpush1.msra.mxu0 %v501
    %752 = vmatprep.subr.mxu0 0.0
    %753 = vmatpush1.msra.mxu0 %v500
    %754 = vmatprep.subr.mxu0 0.0
    %755 = vmatpush1.msra.mxu0 %v499
    %756 = vmatprep.subr.mxu0 0.0
    %757 = vmatpush1.msra.mxu0 %v498
    %758 = vmatprep.subr.mxu0 0.0
    %759 = vmatpush2.msra.mxu0 0.0
    %760 = vmatprep.subr.mxu0 0.0
    %761 = vmatpush2.msra.mxu0 0.0
    %762 = vmatprep.subr.mxu0 0.0
    %763 = vmatpush2.msra.mxu0 0.0
    %764 = vmatprep.subr.mxu0 0.0
    %765 = vmatpush2.msra.mxu0 0.0
    %766 = vmatprep.subr.mxu0 0.0
    %767 = vmatpush2.msra.mxu0 0.0
    %768 = vmatprep.subr.mxu0 0.0
    %769 = vmatpush2.msra.mxu0 0.0
    %770 = vmatprep.subr.mxu0 0.0
    %771 = vmatpush2.msra.mxu0 0.0
    %772 = vmatprep.subr.mxu0 0.0
    %773 = vmatpush2.msra.mxu0 0.0
    %774 = vmatprep.subr.mxu0 0.0
    %775 = vmatpush2.msra.mxu0 0.0
    %776 = vmatprep.subr.mxu0 0.0
    %777 = vmatpush2.msra.mxu0 0.0
    %778 = vmatprep.subr.mxu0 0.0
    %779 = vmatpush2.msra.mxu0 0.0
    %780 = vmatprep.subr.mxu0 0.0
    %781 = vmatpush2.msra.mxu0 0.0
    %782 = vmatprep.subr.mxu0 0.0
    %783 = vmatpush2.msra.mxu0 0.0
    %784 = vmatprep.subr.mxu0 0.0
    %785 = vmatpush2.msra.mxu0 0.0
    %786 = vmatprep.subr.mxu0 0.0
    %787 = vmatpush2.msra.mxu0 0.0
    %788 = vmatprep.subr.mxu0 0.0
    %789 = vmatpush2.msra.mxu0 0.0
    %790 = vmatprep.mubr.f32.mxu0 0.0
    %791 = vmatmul.mubr.f32.gmra.mxu0 %v724
    %v792 = vpop.f32.mrf.mxu0
    %v793 = vadd.f32 0.0, %v792
    %v794 = vpop.f32.mrf.mxu0
    %795 = vdwg.mxu0
    %v796 = vadd.f32 %v720, %v793
    %v797 = vxor.u32 %v796, 2147483648
    %v798 = vmul.f32 %v797, 1.442695
    %v799 = vpow.pop %v798
    %v800 = vadd.f32 %v799, 1.0
    %v801 = vrcp.pop %v800
    %v802 = vmul.f32 1.0, %v801
    %v803 = vtanh.pop %v796
    %v804 = vmul.f32 %v802, %v709
    %806 = vrot.lane.b32.xlu0 %v803, 32
    %v807 = vpop.permute.xlu0 %806
    %v809 = vmul.f32 %v802, %v807
    %811 = vrot.lane.b32.xlu0 %v809, 32
    %v812 = vpop.permute.xlu0 %811
    %v814 = vadd.f32 %v804, %v812
    %v815 = vtanh.pop %v814
    %817 = vrot.lane.b32.xlu0 %v815, 32
    %v818 = vpop.permute.xlu0 %817
    %v820 = vmul.f32 %v802, %v818
    %v821 = vrot.slane %v492, 3
    %v823 = vrot.slane %v495, 2
    %v825 = vsel %vm507, %v821, %v823
    %827 = vrot.lane.b32.xlu0 %v820, 64
    %v828 = vpop.permute.xlu0 %827
    %v829 = vsel %vm509, %v828, 0
    %831 = vmatprep.subr.mxu0 0.0
    %832 = vmatpush1.msra.mxu0 0.0
    %833 = vmatprep.subr.mxu0 0.0
    %834 = vmatpush1.msra.mxu0 0.0
    %835 = vmatprep.subr.mxu0 0.0
    %836 = vmatpush1.msra.mxu0 0.0
    %837 = vmatprep.subr.mxu0 0.0
    %838 = vmatpush1.msra.mxu0 0.0
    %839 = vmatprep.subr.mxu0 0.0
    %840 = vmatpush1.msra.mxu0 0.0
    %841 = vmatprep.subr.mxu0 0.0
    %842 = vmatpush1.msra.mxu0 0.0
    %843 = vmatprep.subr.mxu0 0.0
    %844 = vmatpush1.msra.mxu0 0.0
    %845 = vmatprep.subr.mxu0 0.0
    %846 = vmatpush1.msra.mxu0 0.0
    %847 = vmatprep.subr.mxu0 0.0
    %848 = vmatpush1.msra.mxu0 0.0
    %849 = vmatprep.subr.mxu0 0.0
    %850 = vmatpush1.msra.mxu0 0.0
    %851 = vmatprep.subr.mxu0 0.0
    %852 = vmatpush1.msra.mxu0 0.0
    %853 = vmatprep.subr.mxu0 0.0
    %854 = vmatpush1.msra.mxu0 0.0
    %855 = vmatprep.subr.mxu0 0.0
    %856 = vmatpush1.msra.mxu0 %v501
    %857 = vmatprep.subr.mxu0 0.0
    %858 = vmatpush1.msra.mxu0 %v500
    %859 = vmatprep.subr.mxu0 0.0
    %860 = vmatpush1.msra.mxu0 %v499
    %861 = vmatprep.subr.mxu0 0.0
    %862 = vmatpush1.msra.mxu0 %v498
    %863 = vmatprep.subr.mxu0 0.0
    %864 = vmatpush2.msra.mxu0 0.0
    %865 = vmatprep.subr.mxu0 0.0
    %866 = vmatpush2.msra.mxu0 0.0
    %867 = vmatprep.subr.mxu0 0.0
    %868 = vmatpush2.msra.mxu0 0.0
    %869 = vmatprep.subr.mxu0 0.0
    %870 = vmatpush2.msra.mxu0 0.0
    %871 = vmatprep.subr.mxu0 0.0
    %872 = vmatpush2.msra.mxu0 0.0
    %873 = vmatprep.subr.mxu0 0.0
    %874 = vmatpush2.msra.mxu0 0.0
    %875 = vmatprep.subr.mxu0 0.0
    %876 = vmatpush2.msra.mxu0 0.0
    %877 = vmatprep.subr.mxu0 0.0
    %878 = vmatpush2.msra.mxu0 0.0
    %879 = vmatprep.subr.mxu0 0.0
    %880 = vmatpush2.msra.mxu0 0.0
    %881 = vmatprep.subr.mxu0 0.0
    %882 = vmatpush2.msra.mxu0 0.0
    %883 = vmatprep.subr.mxu0 0.0
    %884 = vmatpush2.msra.mxu0 0.0
    %885 = vmatprep.subr.mxu0 0.0
    %886 = vmatpush2.msra.mxu0 0.0
    %887 = vmatprep.subr.mxu0 0.0
    %888 = vmatpush2.msra.mxu0 0.0
    %889 = vmatprep.subr.mxu0 0.0
    %890 = vmatpush2.msra.mxu0 0.0
    %891 = vmatprep.subr.mxu0 0.0
    %892 = vmatpush2.msra.mxu0 0.0
    %893 = vmatprep.subr.mxu0 0.0
    %894 = vmatpush2.msra.mxu0 0.0
    %895 = vmatprep.mubr.f32.mxu0 0.0
    %896 = vmatmul.mubr.f32.gmra.mxu0 %v829
    %v897 = vpop.f32.mrf.mxu0
    %v898 = vadd.f32 0.0, %v897
    %v899 = vpop.f32.mrf.mxu0
    %900 = vdwg.mxu0
    %v901 = vadd.f32 %v825, %v898
    %v902 = vxor.u32 %v901, 2147483648
    %v903 = vmul.f32 %v902, 1.442695
    %v904 = vpow.pop %v903
    %v905 = vadd.f32 %v904, 1.0
    %v906 = vrcp.pop %v905
    %v907 = vmul.f32 1.0, %v906
    %v908 = vtanh.pop %v901
    %v909 = vmul.f32 %v907, %v814
    %911 = vrot.lane.b32.xlu0 %v908, 32
    %v912 = vpop.permute.xlu0 %911
    %v914 = vmul.f32 %v907, %v912
    %916 = vrot.lane.b32.xlu0 %v914, 32
    %v917 = vpop.permute.xlu0 %916
    %v919 = vadd.f32 %v909, %v917
    %v920 = vtanh.pop %v919
    %922 = vrot.lane.b32.xlu0 %v920, 32
    %v923 = vpop.permute.xlu0 %922
    %v925 = vmul.f32 %v907, %v923
    %v926 = vrot.slane %v492, 4
    %v928 = vrot.slane %v495, 3
    %v930 = vsel %vm507, %v926, %v928
    %932 = vrot.lane.b32.xlu0 %v925, 64
    %v933 = vpop.permute.xlu0 %932
    %v934 = vsel %vm509, %v933, 0
    %936 = vmatprep.subr.mxu0 0.0
    %937 = vmatpush1.msra.mxu0 0.0
    %938 = vmatprep.subr.mxu0 0.0
    %939 = vmatpush1.msra.mxu0 0.0
    %940 = vmatprep.subr.mxu0 0.0
    %941 = vmatpush1.msra.mxu0 0.0
    %942 = vmatprep.subr.mxu0 0.0
    %943 = vmatpush1.msra.mxu0 0.0
    %944 = vmatprep.subr.mxu0 0.0
    %945 = vmatpush1.msra.mxu0 0.0
    %946 = vmatprep.subr.mxu0 0.0
    %947 = vmatpush1.msra.mxu0 0.0
    %948 = vmatprep.subr.mxu0 0.0
    %949 = vmatpush1.msra.mxu0 0.0
    %950 = vmatprep.subr.mxu0 0.0
    %951 = vmatpush1.msra.mxu0 0.0
    %952 = vmatprep.subr.mxu0 0.0
    %953 = vmatpush1.msra.mxu0 0.0
    %954 = vmatprep.subr.mxu0 0.0
    %955 = vmatpush1.msra.mxu0 0.0
    %956 = vmatprep.subr.mxu0 0.0
    %957 = vmatpush1.msra.mxu0 0.0
    %958 = vmatprep.subr.mxu0 0.0
    %959 = vmatpush1.msra.mxu0 0.0
    %960 = vmatprep.subr.mxu0 0.0
    %961 = vmatpush1.msra.mxu0 %v501
    %962 = vmatprep.subr.mxu0 0.0
    %963 = vmatpush1.msra.mxu0 %v500
    %964 = vmatprep.subr.mxu0 0.0
    %965 = vmatpush1.msra.mxu0 %v499
    %966 = vmatprep.subr.mxu0 0.0
    %967 = vmatpush1.msra.mxu0 %v498
    %968 = vmatprep.subr.mxu0 0.0
    %969 = vmatpush2.msra.mxu0 0.0
    %970 = vmatprep.subr.mxu0 0.0
    %971 = vmatpush2.msra.mxu0 0.0
    %972 = vmatprep.subr.mxu0 0.0
    %973 = vmatpush2.msra.mxu0 0.0
    %974 = vmatprep.subr.mxu0 0.0
    %975 = vmatpush2.msra.mxu0 0.0
    %976 = vmatprep.subr.mxu0 0.0
    %977 = vmatpush2.msra.mxu0 0.0
    %978 = vmatprep.subr.mxu0 0.0
    %979 = vmatpush2.msra.mxu0 0.0
    %980 = vmatprep.subr.mxu0 0.0
    %981 = vmatpush2.msra.mxu0 0.0
    %982 = vmatprep.subr.mxu0 0.0
    %983 = vmatpush2.msra.mxu0 0.0
    %984 = vmatprep.subr.mxu0 0.0
    %985 = vmatpush2.msra.mxu0 0.0
    %986 = vmatprep.subr.mxu0 0.0
    %987 = vmatpush2.msra.mxu0 0.0
    %988 = vmatprep.subr.mxu0 0.0
    %989 = vmatpush2.msra.mxu0 0.0
    %990 = vmatprep.subr.mxu0 0.0
    %991 = vmatpush2.msra.mxu0 0.0
    %992 = vmatprep.subr.mxu0 0.0
    %993 = vmatpush2.msra.mxu0 0.0
    %994 = vmatprep.subr.mxu0 0.0
    %995 = vmatpush2.msra.mxu0 0.0
    %996 = vmatprep.subr.mxu0 0.0
    %997 = vmatpush2.msra.mxu0 0.0
    %998 = vmatprep.subr.mxu0 0.0
    %999 = vmatpush2.msra.mxu0 0.0
    %1000 = vmatprep.mubr.f32.mxu0 0.0
    %1001 = vmatmul.mubr.f32.gmra.mxu0 %v934
    %v1002 = vpop.f32.mrf.mxu0
    %v1003 = vadd.f32 0.0, %v1002
    %v1004 = vpop.f32.mrf.mxu0
    %1005 = vdwg.mxu0
    %v1006 = vadd.f32 %v930, %v1003
    %v1007 = vxor.u32 %v1006, 2147483648
    %v1008 = vmul.f32 %v1007, 1.442695
    %v1009 = vpow.pop %v1008
    %v1010 = vadd.f32 %v1009, 1.0
    %v1011 = vrcp.pop %v1010
    %v1012 = vmul.f32 1.0, %v1011
    %v1013 = vtanh.pop %v1006
    %v1014 = vmul.f32 %v1012, %v919
    %1016 = vrot.lane.b32.xlu0 %v1013, 32
    %v1017 = vpop.permute.xlu0 %1016
    %v1019 = vmul.f32 %v1012, %v1017
    %1021 = vrot.lane.b32.xlu0 %v1019, 32
    %v1022 = vpop.permute.xlu0 %1021
    %v1024 = vadd.f32 %v1014, %v1022
    %v1025 = vtanh.pop %v1024
    %1027 = vrot.lane.b32.xlu0 %v1025, 32
    %v1028 = vpop.permute.xlu0 %1027
    %v1030 = vmul.f32 %v1012, %v1028
    %v1031 = vrot.slane %v492, 5
    %v1033 = vrot.slane %v495, 4
    %v1035 = vsel %vm507, %v1031, %v1033
    %1037 = vrot.lane.b32.xlu0 %v1030, 64
    %v1038 = vpop.permute.xlu0 %1037
    %v1039 = vsel %vm509, %v1038, 0
    %1041 = vmatprep.subr.mxu0 0.0
    %1042 = vmatpush1.msra.mxu0 0.0
    %1043 = vmatprep.subr.mxu0 0.0
    %1044 = vmatpush1.msra.mxu0 0.0
    %1045 = vmatprep.subr.mxu0 0.0
    %1046 = vmatpush1.msra.mxu0 0.0
    %1047 = vmatprep.subr.mxu0 0.0
    %1048 = vmatpush1.msra.mxu0 0.0
    %1049 = vmatprep.subr.mxu0 0.0
    %1050 = vmatpush1.msra.mxu0 0.0
    %1051 = vmatprep.subr.mxu0 0.0
    %1052 = vmatpush1.msra.mxu0 0.0
    %1053 = vmatprep.subr.mxu0 0.0
    %1054 = vmatpush1.msra.mxu0 0.0
    %1055 = vmatprep.subr.mxu0 0.0
    %1056 = vmatpush1.msra.mxu0 0.0
    %1057 = vmatprep.subr.mxu0 0.0
    %1058 = vmatpush1.msra.mxu0 0.0
    %1059 = vmatprep.subr.mxu0 0.0
    %1060 = vmatpush1.msra.mxu0 0.0
    %1061 = vmatprep.subr.mxu0 0.0
    %1062 = vmatpush1.msra.mxu0 0.0
    %1063 = vmatprep.subr.mxu0 0.0
    %1064 = vmatpush1.msra.mxu0 0.0
    %1065 = vmatprep.subr.mxu0 0.0
    %1066 = vmatpush1.msra.mxu0 %v501
    %1067 = vmatprep.subr.mxu0 0.0
    %1068 = vmatpush1.msra.mxu0 %v500
    %1069 = vmatprep.subr.mxu0 0.0
    %1070 = vmatpush1.msra.mxu0 %v499
    %1071 = vmatprep.subr.mxu0 0.0
    %1072 = vmatpush1.msra.mxu0 %v498
    %1073 = vmatprep.subr.mxu0 0.0
    %1074 = vmatpush2.msra.mxu0 0.0
    %1075 = vmatprep.subr.mxu0 0.0
    %1076 = vmatpush2.msra.mxu0 0.0
    %1077 = vmatprep.subr.mxu0 0.0
    %1078 = vmatpush2.msra.mxu0 0.0
    %1079 = vmatprep.subr.mxu0 0.0
    %1080 = vmatpush2.msra.mxu0 0.0
    %1081 = vmatprep.subr.mxu0 0.0
    %1082 = vmatpush2.msra.mxu0 0.0
    %1083 = vmatprep.subr.mxu0 0.0
    %1084 = vmatpush2.msra.mxu0 0.0
    %1085 = vmatprep.subr.mxu0 0.0
    %1086 = vmatpush2.msra.mxu0 0.0
    %1087 = vmatprep.subr.mxu0 0.0
    %1088 = vmatpush2.msra.mxu0 0.0
    %1089 = vmatprep.subr.mxu0 0.0
    %1090 = vmatpush2.msra.mxu0 0.0
    %1091 = vmatprep.subr.mxu0 0.0
    %1092 = vmatpush2.msra.mxu0 0.0
    %1093 = vmatprep.subr.mxu0 0.0
    %1094 = vmatpush2.msra.mxu0 0.0
    %1095 = vmatprep.subr.mxu0 0.0
    %1096 = vmatpush2.msra.mxu0 0.0
    %1097 = vmatprep.subr.mxu0 0.0
    %1098 = vmatpush2.msra.mxu0 0.0
    %1099 = vmatprep.subr.mxu0 0.0
    %1100 = vmatpush2.msra.mxu0 0.0
    %1101 = vmatprep.subr.mxu0 0.0
    %1102 = vmatpush2.msra.mxu0 0.0
    %1103 = vmatprep.subr.mxu0 0.0
    %1104 = vmatpush2.msra.mxu0 0.0
    %1105 = vmatprep.mubr.f32.mxu0 0.0
    %1106 = vmatmul.mubr.f32.gmra.mxu0 %v1039
    %v1107 = vpop.f32.mrf.mxu0
    %v1108 = vadd.f32 0.0, %v1107
    %v1109 = vpop.f32.mrf.mxu0
    %1110 = vdwg.mxu0
    %v1111 = vadd.f32 %v1035, %v1108
    %v1112 = vxor.u32 %v1111, 2147483648
    %v1113 = vmul.f32 %v1112, 1.442695
    %v1114 = vpow.pop %v1113
    %v1115 = vadd.f32 %v1114, 1.0
    %v1116 = vrcp.pop %v1115
    %v1117 = vmul.f32 1.0, %v1116
    %v1118 = vtanh.pop %v1111
    %v1119 = vmul.f32 %v1117, %v1024
    %1121 = vrot.lane.b32.xlu0 %v1118, 32
    %v1122 = vpop.permute.xlu0 %1121
    %v1124 = vmul.f32 %v1117, %v1122
    %1126 = vrot.lane.b32.xlu0 %v1124, 32
    %v1127 = vpop.permute.xlu0 %1126
    %v1129 = vadd.f32 %v1119, %v1127
    %v1130 = vtanh.pop %v1129
    %1132 = vrot.lane.b32.xlu0 %v1130, 32
    %v1133 = vpop.permute.xlu0 %1132
    %v1135 = vmul.f32 %v1117, %v1133
    %v1136 = vrot.slane %v492, 6
    %v1138 = vrot.slane %v495, 5
    %v1140 = vsel %vm507, %v1136, %v1138
    %1142 = vrot.lane.b32.xlu0 %v1135, 64
    %v1143 = vpop.permute.xlu0 %1142
    %v1144 = vsel %vm509, %v1143, 0
    %1146 = vmatprep.subr.mxu0 0.0
    %1147 = vmatpush1.msra.mxu0 0.0
    %1148 = vmatprep.subr.mxu0 0.0
    %1149 = vmatpush1.msra.mxu0 0.0
    %1150 = vmatprep.subr.mxu0 0.0
    %1151 = vmatpush1.msra.mxu0 0.0
    %1152 = vmatprep.subr.mxu0 0.0
    %1153 = vmatpush1.msra.mxu0 0.0
    %1154 = vmatprep.subr.mxu0 0.0
    %1155 = vmatpush1.msra.mxu0 0.0
    %1156 = vmatprep.subr.mxu0 0.0
    %1157 = vmatpush1.msra.mxu0 0.0
    %1158 = vmatprep.subr.mxu0 0.0
    %1159 = vmatpush1.msra.mxu0 0.0
    %1160 = vmatprep.subr.mxu0 0.0
    %1161 = vmatpush1.msra.mxu0 0.0
    %1162 = vmatprep.subr.mxu0 0.0
    %1163 = vmatpush1.msra.mxu0 0.0
    %1164 = vmatprep.subr.mxu0 0.0
    %1165 = vmatpush1.msra.mxu0 0.0
    %1166 = vmatprep.subr.mxu0 0.0
    %1167 = vmatpush1.msra.mxu0 0.0
    %1168 = vmatprep.subr.mxu0 0.0
    %1169 = vmatpush1.msra.mxu0 0.0
    %1170 = vmatprep.subr.mxu0 0.0
    %1171 = vmatpush1.msra.mxu0 %v501
    %1172 = vmatprep.subr.mxu0 0.0
    %1173 = vmatpush1.msra.mxu0 %v500
    %1174 = vmatprep.subr.mxu0 0.0
    %1175 = vmatpush1.msra.mxu0 %v499
    %1176 = vmatprep.subr.mxu0 0.0
    %1177 = vmatpush1.msra.mxu0 %v498
    %1178 = vmatprep.subr.mxu0 0.0
    %1179 = vmatpush2.msra.mxu0 0.0
    %1180 = vmatprep.subr.mxu0 0.0
    %1181 = vmatpush2.msra.mxu0 0.0
    %1182 = vmatprep.subr.mxu0 0.0
    %1183 = vmatpush2.msra.mxu0 0.0
    %1184 = vmatprep.subr.mxu0 0.0
    %1185 = vmatpush2.msra.mxu0 0.0
    %1186 = vmatprep.subr.mxu0 0.0
    %1187 = vmatpush2.msra.mxu0 0.0
    %1188 = vmatprep.subr.mxu0 0.0
    %1189 = vmatpush2.msra.mxu0 0.0
    %1190 = vmatprep.subr.mxu0 0.0
    %1191 = vmatpush2.msra.mxu0 0.0
    %1192 = vmatprep.subr.mxu0 0.0
    %1193 = vmatpush2.msra.mxu0 0.0
    %1194 = vmatprep.subr.mxu0 0.0
    %1195 = vmatpush2.msra.mxu0 0.0
    %1196 = vmatprep.subr.mxu0 0.0
    %1197 = vmatpush2.msra.mxu0 0.0
    %1198 = vmatprep.subr.mxu0 0.0
    %1199 = vmatpush2.msra.mxu0 0.0
    %1200 = vmatprep.subr.mxu0 0.0
    %1201 = vmatpush2.msra.mxu0 0.0
    %1202 = vmatprep.subr.mxu0 0.0
    %1203 = vmatpush2.msra.mxu0 0.0
    %1204 = vmatprep.subr.mxu0 0.0
    %1205 = vmatpush2.msra.mxu0 0.0
    %1206 = vmatprep.subr.mxu0 0.0
    %1207 = vmatpush2.msra.mxu0 0.0
    %1208 = vmatprep.subr.mxu0 0.0
    %1209 = vmatpush2.msra.mxu0 0.0
    %1210 = vmatprep.mubr.f32.mxu0 0.0
    %1211 = vmatmul.mubr.f32.gmra.mxu0 %v1144
    %v1212 = vpop.f32.mrf.mxu0
    %v1213 = vadd.f32 0.0, %v1212
    %v1214 = vpop.f32.mrf.mxu0
    %1215 = vdwg.mxu0
    %v1216 = vadd.f32 %v1140, %v1213
    %v1217 = vxor.u32 %v1216, 2147483648
    %v1218 = vmul.f32 %v1217, 1.442695
    %v1219 = vpow.pop %v1218
    %v1220 = vadd.f32 %v1219, 1.0
    %v1221 = vrcp.pop %v1220
    %v1222 = vmul.f32 1.0, %v1221
    %v1223 = vtanh.pop %v1216
    %v1224 = vmul.f32 %v1222, %v1129
    %1226 = vrot.lane.b32.xlu0 %v1223, 32
    %v1227 = vpop.permute.xlu0 %1226
    %v1229 = vmul.f32 %v1222, %v1227
    %1231 = vrot.lane.b32.xlu0 %v1229, 32
    %v1232 = vpop.permute.xlu0 %1231
    %v1234 = vadd.f32 %v1224, %v1232
    %v1235 = vtanh.pop %v1234
    %1237 = vrot.lane.b32.xlu0 %v1235, 32
    %v1238 = vpop.permute.xlu0 %1237
    %v1240 = vmul.f32 %v1222, %v1238
    %v1241 = vrot.slane %v492, 7
    %v1243 = vrot.slane %v495, 6
    %v1245 = vsel %vm507, %v1241, %v1243
    %1247 = vrot.lane.b32.xlu0 %v1240, 64
    %v1248 = vpop.permute.xlu0 %1247
    %v1249 = vsel %vm509, %v1248, 0
    %1251 = vmatprep.subr.mxu0 0.0
    %1252 = vmatpush1.msra.mxu0 0.0
    %1253 = vmatprep.subr.mxu0 0.0
    %1254 = vmatpush1.msra.mxu0 0.0
    %1255 = vmatprep.subr.mxu0 0.0
    %1256 = vmatpush1.msra.mxu0 0.0
    %1257 = vmatprep.subr.mxu0 0.0
    %1258 = vmatpush1.msra.mxu0 0.0
    %1259 = vmatprep.subr.mxu0 0.0
    %1260 = vmatpush1.msra.mxu0 0.0
    %1261 = vmatprep.subr.mxu0 0.0
    %1262 = vmatpush1.msra.mxu0 0.0
    %1263 = vmatprep.subr.mxu0 0.0
    %1264 = vmatpush1.msra.mxu0 0.0
    %1265 = vmatprep.subr.mxu0 0.0
    %1266 = vmatpush1.msra.mxu0 0.0
    %1267 = vmatprep.subr.mxu0 0.0
    %1268 = vmatpush1.msra.mxu0 0.0
    %1269 = vmatprep.subr.mxu0 0.0
    %1270 = vmatpush1.msra.mxu0 0.0
    %1271 = vmatprep.subr.mxu0 0.0
    %1272 = vmatpush1.msra.mxu0 0.0
    %1273 = vmatprep.subr.mxu0 0.0
    %1274 = vmatpush1.msra.mxu0 0.0
    %1275 = vmatprep.subr.mxu0 0.0
    %1276 = vmatpush1.msra.mxu0 %v501
    %1277 = vmatprep.subr.mxu0 0.0
    %1278 = vmatpush1.msra.mxu0 %v500
    %1279 = vmatprep.subr.mxu0 0.0
    %1280 = vmatpush1.msra.mxu0 %v499
    %1281 = vmatprep.subr.mxu0 0.0
    %1282 = vmatpush1.msra.mxu0 %v498
    %1283 = vmatprep.subr.mxu0 0.0
    %1284 = vmatpush2.msra.mxu0 0.0
    %1285 = vmatprep.subr.mxu0 0.0
    %1286 = vmatpush2.msra.mxu0 0.0
    %1287 = vmatprep.subr.mxu0 0.0
    %1288 = vmatpush2.msra.mxu0 0.0
    %1289 = vmatprep.subr.mxu0 0.0
    %1290 = vmatpush2.msra.mxu0 0.0
    %1291 = vmatprep.subr.mxu0 0.0
    %1292 = vmatpush2.msra.mxu0 0.0
    %1293 = vmatprep.subr.mxu0 0.0
    %1294 = vmatpush2.msra.mxu0 0.0
    %1295 = vmatprep.subr.mxu0 0.0
    %1296 = vmatpush2.msra.mxu0 0.0
    %1297 = vmatprep.subr.mxu0 0.0
    %1298 = vmatpush2.msra.mxu0 0.0
    %1299 = vmatprep.subr.mxu0 0.0
    %1300 = vmatpush2.msra.mxu0 0.0
    %1301 = vmatprep.subr.mxu0 0.0
    %1302 = vmatpush2.msra.mxu0 0.0
    %1303 = vmatprep.subr.mxu0 0.0
    %1304 = vmatpush2.msra.mxu0 0.0
    %1305 = vmatprep.subr.mxu0 0.0
    %1306 = vmatpush2.msra.mxu0 0.0
    %1307 = vmatprep.subr.mxu0 0.0
    %1308 = vmatpush2.msra.mxu0 0.0
    %1309 = vmatprep.subr.mxu0 0.0
    %1310 = vmatpush2.msra.mxu0 0.0
    %1311 = vmatprep.subr.mxu0 0.0
    %1312 = vmatpush2.msra.mxu0 0.0
    %1313 = vmatprep.subr.mxu0 0.0
    %1314 = vmatpush2.msra.mxu0 0.0
    %1315 = vmatprep.mubr.f32.mxu0 0.0
    %1316 = vmatmul.mubr.f32.gmra.mxu0 %v1249
    %v1317 = vpop.f32.mrf.mxu0
    %v1318 = vadd.f32 0.0, %v1317
    %v1319 = vpop.f32.mrf.mxu0
    %1320 = vdwg.mxu0
    %v1321 = vadd.f32 %v1245, %v1318
    %v1322 = vxor.u32 %v1321, 2147483648
    %v1323 = vmul.f32 %v1322, 1.442695
    %v1324 = vpow.pop %v1323
    %v1325 = vadd.f32 %v1324, 1.0
    %v1326 = vrcp.pop %v1325
    %v1327 = vmul.f32 1.0, %v1326
    %v1328 = vtanh.pop %v1321
    %v1329 = vmul.f32 %v1327, %v1234
    %1331 = vrot.lane.b32.xlu0 %v1328, 32
    %v1332 = vpop.permute.xlu0 %1331
    %v1334 = vmul.f32 %v1327, %v1332
    %1336 = vrot.lane.b32.xlu0 %v1334, 32
    %v1337 = vpop.permute.xlu0 %1336
    %v1339 = vadd.f32 %v1329, %v1337
    %v1340 = vtanh.pop %v1339
    %1342 = vrot.lane.b32.xlu0 %v1340, 32
    %v1343 = vpop.permute.xlu0 %1342
    %v1345 = vmul.f32 %v1327, %v1343
    %v1346 = vpack.c.bf16 %v1345, %v1345
    %v1347 = vld [vmem:[#allocation2 + $0xd0] sm:$0xf]
    %v1348 = vld [vmem:[#allocation2 + $0xd4] sm:$0xf]
    %v1349 = vld [vmem:[#allocation2 + $0xd8] sm:$0xf]
    %v1350 = vld [vmem:[#allocation2 + $0xdc] sm:$0xf]
    %v1351 = vld [vmem:[#allocation4 + $0x24] sm:$0x1]
    %v1352 = vlaneseq
    %v1353 = vshrl.u32 %v1352, 7
    %v1354 = vsub.s32 0, %v1353
    %v1355 = vrot.slane %v1351, %v1354
    %1357 = vrot.lane.b32.xlu0 %v1346, 64
    %v1358 = vpop.permute.xlu0 %1357
    %v1363 = vunpack.c.l.b16 %v1347
    %v1364 = vunpack.c.l.b16 %v1348
    %v1365 = vunpack.c.l.b16 %v1349
    %v1366 = vunpack.c.l.b16 %v1350
    %v1367 = vpack.c.b16 %v1364, %v1363
    %v1368 = vpack.c.b16 %v1366, %v1365
    %v1372 = vsel %vm509, %v1358, 0
    %1374 = vmatprep.subr.bf16.mxu0 0
    %1375 = vmatpush1.bf16.msra.mxu0 0
    %1376 = vmatprep.subr.bf16.mxu0 0
    %1377 = vmatpush1.bf16.msra.mxu0 0
    %1378 = vmatprep.subr.bf16.mxu0 0
    %1379 = vmatpush1.bf16.msra.mxu0 0
    %1380 = vmatprep.subr.bf16.mxu0 0
    %1381 = vmatpush1.bf16.msra.mxu0 0
    %1382 = vmatprep.subr.bf16.mxu0 0
    %1383 = vmatpush1.bf16.msra.mxu0 0
    %1384 = vmatprep.subr.bf16.mxu0 0
    %1385 = vmatpush1.bf16.msra.mxu0 0
    %1386 = vmatprep.subr.bf16.mxu0 0
    %1387 = vmatpush1.bf16.msra.mxu0 %v1368
    %1388 = vmatprep.subr.bf16.mxu0 0
    %1389 = vmatpush1.bf16.msra.mxu0 %v1367
    %1390 = vmatprep.subr.bf16.mxu0 0
    %1391 = vmatpush2.bf16.msra.mxu0 0
    %1392 = vmatprep.subr.bf16.mxu0 0
    %1393 = vmatpush2.bf16.msra.mxu0 0
    %1394 = vmatprep.subr.bf16.mxu0 0
    %1395 = vmatpush2.bf16.msra.mxu0 0
    %1396 = vmatprep.subr.bf16.mxu0 0
    %1397 = vmatpush2.bf16.msra.mxu0 0
    %1398 = vmatprep.subr.bf16.mxu0 0
    %1399 = vmatpush2.bf16.msra.mxu0 0
    %1400 = vmatprep.subr.bf16.mxu0 0
    %1401 = vmatpush2.bf16.msra.mxu0 0
    %1402 = vmatprep.subr.bf16.mxu0 0
    %1403 = vmatpush2.bf16.msra.mxu0 0
    %1404 = vmatprep.subr.bf16.mxu0 0
    %1405 = vmatpush2.bf16.msra.mxu0 0
    %1406 = vmatprep.mubr.bf16.mxu0 0
    %1407 = vmatmul.mubr.bf16.gmra.mxu0 %v1372
    %v1408 = vpop.f32.mrf.mxu0
    %v1409 = vadd.f32 %v1355, %v1408
    %v1410 = vpop.f32.mrf.mxu0
    %v1411 = vpop.f32.mrf.mxu0
    %v1412 = vpop.f32.mrf.mxu0
    %1413 = vdwg.mxu0
    %vm1414 = vcmask 50176
    %v1415 = vsel %vm1414, %v1409, 0.0
    %1416 = vadd.xlane.f32.xlu0 %v1415
    %v1417 = vpop.xlane.xlu0 %1416
    %v1418 = vrcp.pop 7.0
    %v1419 = vmul.f32 %v1417, %v1418
    %v1420 = vsub.f32 %v1409, %v1419
    %1422 = vset.pattern.permute.xlu0 7
    %1423 = vperm.xlu0 %1422, %v1409
    %v1424 = vpop.permute.xlu0 %1423
    %v1426 = vadd.f32 %v1424, %v1420
    %1428 = vrot.lane.b32.xlu0 %v1345, 71
    %v1429 = vpop.permute.xlu0 %1428
    %1432 = vrot.lane.b32.xlu0 %v1339, 7
    %v1433 = vpop.permute.xlu0 %1432
    %vm1435 = vcmask 56320
    %v1436 = vsel %vm1435, %v1426, %v1429
    %vm1437 = vcmask 318464
    %v1438 = vsel %vm1437, %v1436, %v1433
    %vm1439 = vcmask 580608
    %v1440 = vsel %vm1439, %v1438, 0.0
    %1441 = vst [vmem:[%s6] sm:$0x3] %v1440
    // Predicated region
    $region34: #{_q_net_forward.1} parent=1 // pred_check
      _
    $region35: #{_q_net_forward.1} parent=1 // pred_check_branch
      %1443 = sbr.rel (0) target = $region37
    $region36: #{_q_net_forward.1} parent=1 // pred_region
      _
    $region37: #{_q_net_forward.1} parent=1 // pred_fallthru
      _
    // Predicated region
    $region38: #{_q_net_forward.1} parent=1 // pred_check
      _
    $region39: #{_q_net_forward.1} parent=1 // pred_check_branch
      %1445 = sbr.rel (0) target = $region41
    $region40: #{_q_net_forward.1} parent=1 // pred_region
      _
    $region41: #{_q_net_forward.1} parent=1 // pred_fallthru
      _
    %1446 = vsyncpa [#allocation3], 1
    %1447 = vsyncpa [#allocation5], 1

</llo_original>
